<compile_context>
chip_gen: v5e
topology: v5e:2x2
jax: 0.10.0
libtpu: 0.0.40
codegen_flags: <defaults>
</compile_context>

<pallas_src>
import functools

import jax
import jax.numpy as jnp
from jax.experimental import pallas as pl
from jax.experimental.pallas import tpu as pltpu

_LANE = 128


def _round_up(n, m):
    return ((n + m - 1) // m) * m


def _mish_bf16(z):
    # torch.nn.Mish == z * tanh(softplus(z)); softplus threshold = 20.
    # Single-exp rewrite: u = exp(z) -> tanh(log1p(u)) = (u^2 + 2u) / (u^2 + 2u + 2).
    # For z > 20: softplus(z) == z and tanh(z) == 1 in f32, so mish(z) == z.
    u = jnp.exp(jnp.minimum(z, 20.0))
    num = u * (u + 2.0)
    t = num * pl.reciprocal(num + 2.0, approx=True)
    t = jnp.where(z > 20.0, 1.0, t)
    # Dropout == identity in eval mode.  Emit directly in bf16 (next MXU input
    # dtype) so there is no separate full-tile cast pass per layer.
    return (z * t).astype(jnp.bfloat16)


def _layer(h_bf16, w_ref, b_ref):
    # Folded (Linear + BatchNorm) -> Mish.  bf16 MXU operands, f32 accumulation,
    # f32 elementwise math (v5e has no bf16 VPU/EUP).
    z = jnp.dot(h_bf16, w_ref[...], preferred_element_type=jnp.float32) + b_ref[...]
    return _mish_bf16(z)


def _mlp_kernel_small(x_ref, w1_ref, b1_ref,
                      w2_hbm, b2_hbm, w3_hbm, b3_hbm, wl_hbm, bl_hbm,
                      out_ref,
                      w2_v, b2_v, w3_v, b3_v, wl_v, bl_v, sem):
    """Single-grid-step path: overlap fc2/fc3/fc_last weight DMA with compute."""
    srcs_dsts = ((w2_hbm, w2_v), (b2_hbm, b2_v),
                 (w3_hbm, w3_v), (b3_hbm, b3_v),
                 (wl_hbm, wl_v), (bl_hbm, bl_v))
    copies = []
    for i, (src, dst) in enumerate(srcs_dsts):
        cp = pltpu.make_async_copy(src, dst, sem.at[i])
        cp.start()
        copies.append(cp)

    # fc1 (auto-pipelined weights already in VMEM); DMAs for later layers fly
    # underneath this matmul + Mish.
    h = _layer(x_ref[...].astype(jnp.bfloat16), w1_ref, b1_ref)

    copies[0].wait(); copies[1].wait()
    h = _layer(h, w2_v, b2_v)                      # hidden_layers[0]

    copies[2].wait(); copies[3].wait()
    h = _layer(h, w3_v, b3_v)                      # hidden_layers[1]

    copies[4].wait(); copies[5].wait()
    out_ref[...] = (jnp.dot(h, wl_v[...], preferred_element_type=jnp.float32)
                    + bl_v[...])                   # fc_last (lane-padded to 128)


def _mlp_kernel_tiled(x_ref, w1_ref, b1_ref, w2_ref, b2_ref, w3_ref, b3_ref,
                      wl_ref, bl_ref, out_ref):
    """Multi-step path: weights VMEM-resident (constant index maps), batch tiled."""
    h = _layer(x_ref[...].astype(jnp.bfloat16), w1_ref, b1_ref)   # fc1
    h = _layer(h, w2_ref, b2_ref)                                  # hidden_layers[0]
    h = _layer(h, w3_ref, b3_ref)                                  # hidden_layers[1]
    out_ref[...] = (jnp.dot(h, wl_ref[...], preferred_element_type=jnp.float32)
                    + bl_ref[...])                                 # fc_last


def _resident_spec(arr):
    # Constant index map -> fetched once, reused across all grid steps.
    # Buffered(1): the second pipeline buffer is pure VMEM waste for a tensor
    # that is never re-DMA'd (matters if hidden_dim scales, esp. on v7x).
    idx = lambda i: (0, 0)
    try:
        return pl.BlockSpec(arr.shape, idx, pipeline_mode=pl.Buffered(1))
    except (AttributeError, TypeError):
        return pl.BlockSpec(arr.shape, idx)


def audio_classifier_forward(x, kernel_params, num_classes, *, block_b=1024,
                             slice_logits=True):
    """Eval-mode forward.  x: (B, feature_dim) f32.

    Returns (B, num_classes) f32 logits if slice_logits, else the lane-padded
    (B, 128*k) slab (padded columns are exactly zero) so the consumer can slice /
    softmax over :num_classes without an extra HBM round trip.
    """
    (w1, b1, w2, b2, w3, b3, wl, bl) = kernel_params
    B, F = x.shape
    H = w1.shape[1]
    OUTP = wl.shape[1]                                   # lane-padded multiple of 128

    # Batch tile: >=16 rows (bf16 sublane packing / MXU M), capped by block_b.
    TB = min(block_b, _round_up(B, 16))
    # v7x megacore: "parallel" only shards across the 2 TensorCores if the grid
    # has >= 2 steps; cap TB when the batch allows it (harmless on v5e/v6e).
    if B > 16 and (B + TB - 1) // TB < 2:
        TB = _round_up((B + 1) // 2, 16)
    n_steps = (B + TB - 1) // TB

    flops = 2 * B * (F * H + 2 * H * H + H * OUTP)
    weight_bytes = sum(int(p.size) * p.dtype.itemsize for p in kernel_params)
    bytes_accessed = x.size * 4 + B * OUTP * 4 + weight_bytes
    cost = pl.CostEstimate(flops=flops,
                           transcendentals=2 * 3 * B * H,   # exp + recip per Mish
                           bytes_accessed=bytes_accessed)

    # Explicit VMEM budget: weights (once) + double-buffered x/out tiles, 2x headroom.
    act_bytes = 2 * TB * (F + OUTP) * 4
    vmem_limit = int(min(100 << 20, max(16 << 20, 2 * (weight_bytes + act_bytes))))

    if n_steps == 1:
        # Small-batch / single-step path: manual DMA overlap for later layers.
        kernel = _mlp_kernel_small
        in_specs = ([pl.BlockSpec((TB, F), lambda i: (i, 0)),
                     pl.BlockSpec(w1.shape, lambda i: (0, 0)),
                     pl.BlockSpec(b1.shape, lambda i: (0, 0))]
                    + [pl.BlockSpec(memory_space=pl.ANY)] * 6)
        scratch = [pltpu.VMEM(w2.shape, w2.dtype),
                   pltpu.VMEM(b2.shape, b2.dtype),
                   pltpu.VMEM(w3.shape, w3.dtype),
                   pltpu.VMEM(b3.shape, b3.dtype),
                   pltpu.VMEM(wl.shape, wl.dtype),
                   pltpu.VMEM(bl.shape, bl.dtype),
                   pltpu.SemaphoreType.DMA((6,))]
        dim_sems = ("arbitrary",)
    else:
        # Large-batch path: weights resident, batch axis parallel (megacore).
        kernel = _mlp_kernel_tiled
        in_specs = [pl.BlockSpec((TB, F), lambda i: (i, 0)),
                    _resident_spec(w1), _resident_spec(b1),
                    _resident_spec(w2), _resident_spec(b2),
                    _resident_spec(w3), _resident_spec(b3),
                    _resident_spec(wl), _resident_spec(bl)]
        scratch = []
        dim_sems = ("parallel",)

    out = pl.pallas_call(
        kernel,
        out_shape=jax.ShapeDtypeStruct((B, OUTP), jnp.float32),
        grid=(n_steps,),
        in_specs=in_specs,
        out_specs=pl.BlockSpec((TB, OUTP), lambda i: (i, 0)),
        scratch_shapes=scratch,
        compiler_params=pltpu.CompilerParams(
            dimension_semantics=dim_sems,
            vmem_limit_bytes=vmem_limit),
        cost_estimate=cost,
    )(x, w1, b1, w2, b2, w3, b3, wl, bl)

    return out[:, :num_classes] if slice_logits else out


def init_raw_params(key, feature_dim=256, hidden_dim=256, num_classes=4,
                    num_hidden_layers=2):
    """Deterministic synthetic parameters mirroring the PyTorch module."""
    keys = jax.random.split(key, 64)
    ki = iter(range(64))

    def linear(in_d, out_d):
        bound = 1.0 / jnp.sqrt(in_d)
        w = jax.random.uniform(keys[next(ki)], (in_d, out_d), jnp.float32, -bound, bound)
        b = jax.random.uniform(keys[next(ki)], (1, out_d), jnp.float32, -bound, bound)
        return w, b

    def bn(dim):
        gamma = 1.0 + 0.1 * jax.random.normal(keys[next(ki)], (1, dim), jnp.float32)
        beta = 0.1 * jax.random.normal(keys[next(ki)], (1, dim), jnp.float32)
        mean = 0.05 * jax.random.normal(keys[next(ki)], (1, dim), jnp.float32)
        var = 1.0 + 0.1 * jax.random.uniform(keys[next(ki)], (1, dim), jnp.float32)
        return gamma, beta, mean, var

    dims = [feature_dim] + [hidden_dim] * (1 + num_hidden_layers)
    layers = []
    for i in range(1 + num_hidden_layers):                      # fc1 + hidden layers
        w, b = linear(dims[i], dims[i + 1])
        layers.append((w, b) + bn(dims[i + 1]))
    wl, bl = linear(hidden_dim, num_classes)                    # fc_last
    return layers, (wl, bl)


def prepare_kernel_params(raw, eps=1e-5, mxu_dtype=jnp.bfloat16):
    """Fold eval-mode BatchNorm1d into each Linear, cast MXU operands to bf16,
    lane-pad the classifier head to a 128-wide output slab.
    (Optional further compression: int8 weights on v5e/v6e, fp8 on v7x.)"""
    layers, (wl, bl) = raw
    folded = []
    for (w, b, gamma, beta, mean, var) in layers:
        scale = gamma / jnp.sqrt(var + eps)                     # (1, out), f32 fold
        w_f = (w * scale).astype(mxu_dtype)                     # scale columns, cast last
        b_f = ((b - mean) * scale + beta).astype(jnp.float32)   # folded bias stays f32
        folded += [w_f, b_f]
    n_out = wl.shape[1]
    out_p = _round_up(n_out, _LANE)
    wl_p = jnp.zeros((wl.shape[0], out_p), jnp.float32).at[:, :n_out].set(wl)
    bl_p = jnp.zeros((1, out_p), jnp.float32).at[:, :n_out].set(bl)
    folded += [wl_p.astype(mxu_dtype), bl_p]
    return tuple(folded)


def _reference_forward(x, raw, eps=1e-5):
    """Pure-JAX eval-mode reference with exact torch semantics (f32 everywhere)."""
    layers, (wl, bl) = raw

    def mish(z):
        sp = jnp.where(z > 20.0, z, jnp.log1p(jnp.exp(jnp.minimum(z, 20.0))))
        return z * jnp.tanh(sp)

    h = x
    for (w, b, gamma, beta, mean, var) in layers:
        z = h @ w + b
        z = (z - mean) / jnp.sqrt(var + eps) * gamma + beta
        h = mish(z)
    return h @ wl + bl


if __name__ == "__main__":
    key = jax.random.PRNGKey(0)
    k_param, k_x = jax.random.split(key)

    B, FEATURE_DIM, HIDDEN_DIM, NUM_CLASSES = 8, 256, 256, 4
    raw = init_raw_params(k_param, FEATURE_DIM, HIDDEN_DIM, NUM_CLASSES)
    kparams = prepare_kernel_params(raw)
    x = jax.random.normal(k_x, (B, FEATURE_DIM), jnp.float32)

    # Return the lane-padded slab and slice at the consumer (avoids an extra
    # HBM-roundtrip slice op right after the kernel).
    fwd = jax.jit(functools.partial(audio_classifier_forward,
                                    num_classes=NUM_CLASSES, slice_logits=False))
    padded = fwd(x, kparams)
    jax.block_until_ready(padded)
    logits = padded[:, :NUM_CLASSES]

    ref = _reference_forward(x, raw)
    assert logits.shape == (B, NUM_CLASSES)
    # bf16 MXU operands + bf16 inter-layer activations + approx reciprocal in Mish
    # => looser tolerance than pure f32.
    max_err = float(jnp.max(jnp.abs(logits - ref)))
    assert jnp.allclose(logits, ref, atol=5e-2, rtol=5e-2), max_err

    print("KERNEL_OK")
</pallas_src>

<mosaic_0001>
module attributes {stable_mosaic.version = 11 : i64} {
  func.func @_mlp_kernel_small(%arg0: i32, %arg1: memref<16x256xf32, #tpu.memory_space<vmem>>, %arg2: memref<256x256xbf16, #tpu.memory_space<vmem>>, %arg3: memref<1x256xf32, #tpu.memory_space<vmem>>, %arg4: memref<256x256xbf16, #tpu.memory_space<any>>, %arg5: memref<1x256xf32, #tpu.memory_space<any>>, %arg6: memref<256x256xbf16, #tpu.memory_space<any>>, %arg7: memref<1x256xf32, #tpu.memory_space<any>>, %arg8: memref<256x128xbf16, #tpu.memory_space<any>>, %arg9: memref<1x128xf32, #tpu.memory_space<any>>, %arg10: memref<16x128xf32, #tpu.memory_space<vmem>>, %arg11: memref<256x256xbf16, #tpu.memory_space<vmem>>, %arg12: memref<1x256xf32, #tpu.memory_space<vmem>>, %arg13: memref<256x256xbf16, #tpu.memory_space<vmem>>, %arg14: memref<1x256xf32, #tpu.memory_space<vmem>>, %arg15: memref<256x128xbf16, #tpu.memory_space<vmem>>, %arg16: memref<1x128xf32, #tpu.memory_space<vmem>>, %arg17: memref<6x!tpu.dma_semaphore, #tpu.memory_space<semaphore_mem>>) attributes {dimension_semantics = [#tpu.dimension_semantics<arbitrary>], iteration_bounds = array<i64: 1>, scalar_prefetch = 0 : i64, scratch_operands = 7 : i64, tpu.core_type = #tpu.core_type<tc>, window_params = [{transform_indices = @transform_0, window_bounds = array<i64: 16, 256>}, {pipeline_mode = #tpu.pipeline_mode<synchronous>, transform_indices = @transform_1, window_bounds = array<i64: 256, 256>}, {pipeline_mode = #tpu.pipeline_mode<synchronous>, transform_indices = @transform_2, window_bounds = array<i64: 1, 256>}, {}, {}, {}, {}, {}, {}, {transform_indices = @transform_9, window_bounds = array<i64: 16, 128>}]} {
    %c0_i32 = arith.constant 0 : i32
    %0 = tpu.memref_slice %arg17[%c0_i32] : memref<6x!tpu.dma_semaphore, #tpu.memory_space<semaphore_mem>> -> memref<1x!tpu.dma_semaphore, #tpu.memory_space<semaphore_mem>>
    %1 = tpu.memref_squeeze %0 : memref<1x!tpu.dma_semaphore, #tpu.memory_space<semaphore_mem>> -> memref<!tpu.dma_semaphore, #tpu.memory_space<semaphore_mem>>
    tpu.enqueue_dma source(%arg4 : memref<256x256xbf16, #tpu.memory_space<any>>) target(%arg11 : memref<256x256xbf16, #tpu.memory_space<vmem>>) target_semaphore(%1 : memref<!tpu.dma_semaphore, #tpu.memory_space<semaphore_mem>>)
    %c1_i32 = arith.constant 1 : i32
    %2 = tpu.memref_slice %arg17[%c1_i32] : memref<6x!tpu.dma_semaphore, #tpu.memory_space<semaphore_mem>> -> memref<1x!tpu.dma_semaphore, #tpu.memory_space<semaphore_mem>>
    %3 = tpu.memref_squeeze %2 : memref<1x!tpu.dma_semaphore, #tpu.memory_space<semaphore_mem>> -> memref<!tpu.dma_semaphore, #tpu.memory_space<semaphore_mem>>
    tpu.enqueue_dma source(%arg5 : memref<1x256xf32, #tpu.memory_space<any>>) target(%arg12 : memref<1x256xf32, #tpu.memory_space<vmem>>) target_semaphore(%3 : memref<!tpu.dma_semaphore, #tpu.memory_space<semaphore_mem>>)
    %c2_i32 = arith.constant 2 : i32
    %4 = tpu.memref_slice %arg17[%c2_i32] : memref<6x!tpu.dma_semaphore, #tpu.memory_space<semaphore_mem>> -> memref<1x!tpu.dma_semaphore, #tpu.memory_space<semaphore_mem>>
    %5 = tpu.memref_squeeze %4 : memref<1x!tpu.dma_semaphore, #tpu.memory_space<semaphore_mem>> -> memref<!tpu.dma_semaphore, #tpu.memory_space<semaphore_mem>>
    tpu.enqueue_dma source(%arg6 : memref<256x256xbf16, #tpu.memory_space<any>>) target(%arg13 : memref<256x256xbf16, #tpu.memory_space<vmem>>) target_semaphore(%5 : memref<!tpu.dma_semaphore, #tpu.memory_space<semaphore_mem>>)
    %c3_i32 = arith.constant 3 : i32
    %6 = tpu.memref_slice %arg17[%c3_i32] : memref<6x!tpu.dma_semaphore, #tpu.memory_space<semaphore_mem>> -> memref<1x!tpu.dma_semaphore, #tpu.memory_space<semaphore_mem>>
    %7 = tpu.memref_squeeze %6 : memref<1x!tpu.dma_semaphore, #tpu.memory_space<semaphore_mem>> -> memref<!tpu.dma_semaphore, #tpu.memory_space<semaphore_mem>>
    tpu.enqueue_dma source(%arg7 : memref<1x256xf32, #tpu.memory_space<any>>) target(%arg14 : memref<1x256xf32, #tpu.memory_space<vmem>>) target_semaphore(%7 : memref<!tpu.dma_semaphore, #tpu.memory_space<semaphore_mem>>)
    %c4_i32 = arith.constant 4 : i32
    %8 = tpu.memref_slice %arg17[%c4_i32] : memref<6x!tpu.dma_semaphore, #tpu.memory_space<semaphore_mem>> -> memref<1x!tpu.dma_semaphore, #tpu.memory_space<semaphore_mem>>
    %9 = tpu.memref_squeeze %8 : memref<1x!tpu.dma_semaphore, #tpu.memory_space<semaphore_mem>> -> memref<!tpu.dma_semaphore, #tpu.memory_space<semaphore_mem>>
    tpu.enqueue_dma source(%arg8 : memref<256x128xbf16, #tpu.memory_space<any>>) target(%arg15 : memref<256x128xbf16, #tpu.memory_space<vmem>>) target_semaphore(%9 : memref<!tpu.dma_semaphore, #tpu.memory_space<semaphore_mem>>)
    %c5_i32 = arith.constant 5 : i32
    %10 = tpu.memref_slice %arg17[%c5_i32] : memref<6x!tpu.dma_semaphore, #tpu.memory_space<semaphore_mem>> -> memref<1x!tpu.dma_semaphore, #tpu.memory_space<semaphore_mem>>
    %11 = tpu.memref_squeeze %10 : memref<1x!tpu.dma_semaphore, #tpu.memory_space<semaphore_mem>> -> memref<!tpu.dma_semaphore, #tpu.memory_space<semaphore_mem>>
    tpu.enqueue_dma source(%arg9 : memref<1x128xf32, #tpu.memory_space<any>>) target(%arg16 : memref<1x128xf32, #tpu.memory_space<vmem>>) target_semaphore(%11 : memref<!tpu.dma_semaphore, #tpu.memory_space<semaphore_mem>>)
    %c0 = arith.constant 0 : index
    %c0_0 = arith.constant 0 : index
    %12 = vector.load %arg1[%c0, %c0_0] : memref<16x256xf32, #tpu.memory_space<vmem>>, vector<16x256xf32>
    %13 = arith.truncf %12 : vector<16x256xf32> to vector<16x256xbf16>
    %c0_1 = arith.constant 0 : index
    %c0_2 = arith.constant 0 : index
    %14 = vector.load %arg2[%c0_1, %c0_2] : memref<256x256xbf16, #tpu.memory_space<vmem>>, vector<256x256xbf16>
    %cst = arith.constant dense<0.000000e+00> : vector<16x256xf32>
    %15 = tpu.matmul %13, %14, %cst {dimension_numbers = #tpu.dot_dimension_numbers<[1], [0], [0], [1], [0, 0, 1, 1], [], []>} : vector<16x256xbf16>, vector<256x256xbf16>, vector<16x256xf32> -> vector<16x256xf32>
    %c0_3 = arith.constant 0 : index
    %c0_4 = arith.constant 0 : index
    %16 = vector.load %arg3[%c0_3, %c0_4] : memref<1x256xf32, #tpu.memory_space<vmem>>, vector<1x256xf32>
    %17 = vector.broadcast %16 : vector<1x256xf32> to vector<16x256xf32>
    %18 = arith.addf %15, %17 : vector<16x256xf32>
    %cst_5 = arith.constant 2.000000e+01 : f32
    %19 = vector.broadcast %cst_5 : f32 to vector<16x256xf32>
    %20 = arith.minimumf %18, %19 : vector<16x256xf32>
    %21 = math.exp %20 : vector<16x256xf32>
    %cst_6 = arith.constant 2.000000e+00 : f32
    %22 = vector.broadcast %cst_6 : f32 to vector<16x256xf32>
    %23 = arith.addf %21, %22 : vector<16x256xf32>
    %24 = arith.mulf %21, %23 : vector<16x256xf32>
    %cst_7 = arith.constant 2.000000e+00 : f32
    %25 = vector.broadcast %cst_7 : f32 to vector<16x256xf32>
    %26 = arith.addf %24, %25 : vector<16x256xf32>
    %27 = tpu.reciprocal %26 {approx = true} : vector<16x256xf32> -> vector<16x256xf32>
    %28 = arith.mulf %24, %27 : vector<16x256xf32>
    %cst_8 = arith.constant 2.000000e+01 : f32
    %29 = vector.broadcast %cst_8 : f32 to vector<16x256xf32>
    %30 = arith.cmpf ogt, %18, %29 : vector<16x256xf32>
    %cst_9 = arith.constant 1.000000e+00 : f32
    %31 = vector.broadcast %cst_9 : f32 to vector<16x256xf32>
    %32 = arith.select %30, %31, %28 : vector<16x256xi1>, vector<16x256xf32>
    %33 = arith.mulf %18, %32 : vector<16x256xf32>
    %34 = arith.truncf %33 : vector<16x256xf32> to vector<16x256xbf16>
    %c0_i32_10 = arith.constant 0 : i32
    %35 = tpu.memref_slice %arg17[%c0_i32_10] : memref<6x!tpu.dma_semaphore, #tpu.memory_space<semaphore_mem>> -> memref<1x!tpu.dma_semaphore, #tpu.memory_space<semaphore_mem>>
    %36 = tpu.memref_squeeze %35 : memref<1x!tpu.dma_semaphore, #tpu.memory_space<semaphore_mem>> -> memref<!tpu.dma_semaphore, #tpu.memory_space<semaphore_mem>>
    tpu.wait_dma2 semaphore(%36 : memref<!tpu.dma_semaphore, #tpu.memory_space<semaphore_mem>>) src(%arg4 : memref<256x256xbf16, #tpu.memory_space<any>>) dst(%arg11 : memref<256x256xbf16, #tpu.memory_space<vmem>>)
    %c1_i32_11 = arith.constant 1 : i32
    %37 = tpu.memref_slice %arg17[%c1_i32_11] : memref<6x!tpu.dma_semaphore, #tpu.memory_space<semaphore_mem>> -> memref<1x!tpu.dma_semaphore, #tpu.memory_space<semaphore_mem>>
    %38 = tpu.memref_squeeze %37 : memref<1x!tpu.dma_semaphore, #tpu.memory_space<semaphore_mem>> -> memref<!tpu.dma_semaphore, #tpu.memory_space<semaphore_mem>>
    tpu.wait_dma2 semaphore(%38 : memref<!tpu.dma_semaphore, #tpu.memory_space<semaphore_mem>>) src(%arg5 : memref<1x256xf32, #tpu.memory_space<any>>) dst(%arg12 : memref<1x256xf32, #tpu.memory_space<vmem>>)
    %c0_12 = arith.constant 0 : index
    %c0_13 = arith.constant 0 : index
    %39 = vector.load %arg11[%c0_12, %c0_13] : memref<256x256xbf16, #tpu.memory_space<vmem>>, vector<256x256xbf16>
    %cst_14 = arith.constant dense<0.000000e+00> : vector<16x256xf32>
    %40 = tpu.matmul %34, %39, %cst_14 {dimension_numbers = #tpu.dot_dimension_numbers<[1], [0], [0], [1], [0, 0, 1, 1], [], []>} : vector<16x256xbf16>, vector<256x256xbf16>, vector<16x256xf32> -> vector<16x256xf32>
    %c0_15 = arith.constant 0 : index
    %c0_16 = arith.constant 0 : index
    %41 = vector.load %arg12[%c0_15, %c0_16] : memref<1x256xf32, #tpu.memory_space<vmem>>, vector<1x256xf32>
    %42 = vector.broadcast %41 : vector<1x256xf32> to vector<16x256xf32>
    %43 = arith.addf %40, %42 : vector<16x256xf32>
    %cst_17 = arith.constant 2.000000e+01 : f32
    %44 = vector.broadcast %cst_17 : f32 to vector<16x256xf32>
    %45 = arith.minimumf %43, %44 : vector<16x256xf32>
    %46 = math.exp %45 : vector<16x256xf32>
    %cst_18 = arith.constant 2.000000e+00 : f32
    %47 = vector.broadcast %cst_18 : f32 to vector<16x256xf32>
    %48 = arith.addf %46, %47 : vector<16x256xf32>
    %49 = arith.mulf %46, %48 : vector<16x256xf32>
    %cst_19 = arith.constant 2.000000e+00 : f32
    %50 = vector.broadcast %cst_19 : f32 to vector<16x256xf32>
    %51 = arith.addf %49, %50 : vector<16x256xf32>
    %52 = tpu.reciprocal %51 {approx = true} : vector<16x256xf32> -> vector<16x256xf32>
    %53 = arith.mulf %49, %52 : vector<16x256xf32>
    %cst_20 = arith.constant 2.000000e+01 : f32
    %54 = vector.broadcast %cst_20 : f32 to vector<16x256xf32>
    %55 = arith.cmpf ogt, %43, %54 : vector<16x256xf32>
    %cst_21 = arith.constant 1.000000e+00 : f32
    %56 = vector.broadcast %cst_21 : f32 to vector<16x256xf32>
    %57 = arith.select %55, %56, %53 : vector<16x256xi1>, vector<16x256xf32>
    %58 = arith.mulf %43, %57 : vector<16x256xf32>
    %59 = arith.truncf %58 : vector<16x256xf32> to vector<16x256xbf16>
    %c2_i32_22 = arith.constant 2 : i32
    %60 = tpu.memref_slice %arg17[%c2_i32_22] : memref<6x!tpu.dma_semaphore, #tpu.memory_space<semaphore_mem>> -> memref<1x!tpu.dma_semaphore, #tpu.memory_space<semaphore_mem>>
    %61 = tpu.memref_squeeze %60 : memref<1x!tpu.dma_semaphore, #tpu.memory_space<semaphore_mem>> -> memref<!tpu.dma_semaphore, #tpu.memory_space<semaphore_mem>>
    tpu.wait_dma2 semaphore(%61 : memref<!tpu.dma_semaphore, #tpu.memory_space<semaphore_mem>>) src(%arg6 : memref<256x256xbf16, #tpu.memory_space<any>>) dst(%arg13 : memref<256x256xbf16, #tpu.memory_space<vmem>>)
    %c3_i32_23 = arith.constant 3 : i32
    %62 = tpu.memref_slice %arg17[%c3_i32_23] : memref<6x!tpu.dma_semaphore, #tpu.memory_space<semaphore_mem>> -> memref<1x!tpu.dma_semaphore, #tpu.memory_space<semaphore_mem>>
    %63 = tpu.memref_squeeze %62 : memref<1x!tpu.dma_semaphore, #tpu.memory_space<semaphore_mem>> -> memref<!tpu.dma_semaphore, #tpu.memory_space<semaphore_mem>>
    tpu.wait_dma2 semaphore(%63 : memref<!tpu.dma_semaphore, #tpu.memory_space<semaphore_mem>>) src(%arg7 : memref<1x256xf32, #tpu.memory_space<any>>) dst(%arg14 : memref<1x256xf32, #tpu.memory_space<vmem>>)
    %c0_24 = arith.constant 0 : index
    %c0_25 = arith.constant 0 : index
    %64 = vector.load %arg13[%c0_24, %c0_25] : memref<256x256xbf16, #tpu.memory_space<vmem>>, vector<256x256xbf16>
    %cst_26 = arith.constant dense<0.000000e+00> : vector<16x256xf32>
    %65 = tpu.matmul %59, %64, %cst_26 {dimension_numbers = #tpu.dot_dimension_numbers<[1], [0], [0], [1], [0, 0, 1, 1], [], []>} : vector<16x256xbf16>, vector<256x256xbf16>, vector<16x256xf32> -> vector<16x256xf32>
    %c0_27 = arith.constant 0 : index
    %c0_28 = arith.constant 0 : index
    %66 = vector.load %arg14[%c0_27, %c0_28] : memref<1x256xf32, #tpu.memory_space<vmem>>, vector<1x256xf32>
    %67 = vector.broadcast %66 : vector<1x256xf32> to vector<16x256xf32>
    %68 = arith.addf %65, %67 : vector<16x256xf32>
    %cst_29 = arith.constant 2.000000e+01 : f32
    %69 = vector.broadcast %cst_29 : f32 to vector<16x256xf32>
    %70 = arith.minimumf %68, %69 : vector<16x256xf32>
    %71 = math.exp %70 : vector<16x256xf32>
    %cst_30 = arith.constant 2.000000e+00 : f32
    %72 = vector.broadcast %cst_30 : f32 to vector<16x256xf32>
    %73 = arith.addf %71, %72 : vector<16x256xf32>
    %74 = arith.mulf %71, %73 : vector<16x256xf32>
    %cst_31 = arith.constant 2.000000e+00 : f32
    %75 = vector.broadcast %cst_31 : f32 to vector<16x256xf32>
    %76 = arith.addf %74, %75 : vector<16x256xf32>
    %77 = tpu.reciprocal %76 {approx = true} : vector<16x256xf32> -> vector<16x256xf32>
    %78 = arith.mulf %74, %77 : vector<16x256xf32>
    %cst_32 = arith.constant 2.000000e+01 : f32
    %79 = vector.broadcast %cst_32 : f32 to vector<16x256xf32>
    %80 = arith.cmpf ogt, %68, %79 : vector<16x256xf32>
    %cst_33 = arith.constant 1.000000e+00 : f32
    %81 = vector.broadcast %cst_33 : f32 to vector<16x256xf32>
    %82 = arith.select %80, %81, %78 : vector<16x256xi1>, vector<16x256xf32>
    %83 = arith.mulf %68, %82 : vector<16x256xf32>
    %84 = arith.truncf %83 : vector<16x256xf32> to vector<16x256xbf16>
    %c4_i32_34 = arith.constant 4 : i32
    %85 = tpu.memref_slice %arg17[%c4_i32_34] : memref<6x!tpu.dma_semaphore, #tpu.memory_space<semaphore_mem>> -> memref<1x!tpu.dma_semaphore, #tpu.memory_space<semaphore_mem>>
    %86 = tpu.memref_squeeze %85 : memref<1x!tpu.dma_semaphore, #tpu.memory_space<semaphore_mem>> -> memref<!tpu.dma_semaphore, #tpu.memory_space<semaphore_mem>>
    tpu.wait_dma2 semaphore(%86 : memref<!tpu.dma_semaphore, #tpu.memory_space<semaphore_mem>>) src(%arg8 : memref<256x128xbf16, #tpu.memory_space<any>>) dst(%arg15 : memref<256x128xbf16, #tpu.memory_space<vmem>>)
    %c5_i32_35 = arith.constant 5 : i32
    %87 = tpu.memref_slice %arg17[%c5_i32_35] : memref<6x!tpu.dma_semaphore, #tpu.memory_space<semaphore_mem>> -> memref<1x!tpu.dma_semaphore, #tpu.memory_space<semaphore_mem>>
    %88 = tpu.memref_squeeze %87 : memref<1x!tpu.dma_semaphore, #tpu.memory_space<semaphore_mem>> -> memref<!tpu.dma_semaphore, #tpu.memory_space<semaphore_mem>>
    tpu.wait_dma2 semaphore(%88 : memref<!tpu.dma_semaphore, #tpu.memory_space<semaphore_mem>>) src(%arg9 : memref<1x128xf32, #tpu.memory_space<any>>) dst(%arg16 : memref<1x128xf32, #tpu.memory_space<vmem>>)
    %c0_36 = arith.constant 0 : index
    %c0_37 = arith.constant 0 : index
    %89 = vector.load %arg15[%c0_36, %c0_37] : memref<256x128xbf16, #tpu.memory_space<vmem>>, vector<256x128xbf16>
    %cst_38 = arith.constant dense<0.000000e+00> : vector<16x128xf32>
    %90 = tpu.matmul %84, %89, %cst_38 {dimension_numbers = #tpu.dot_dimension_numbers<[1], [0], [0], [1], [0, 0, 1, 1], [], []>} : vector<16x256xbf16>, vector<256x128xbf16>, vector<16x128xf32> -> vector<16x128xf32>
    %c0_39 = arith.constant 0 : index
    %c0_40 = arith.constant 0 : index
    %91 = vector.load %arg16[%c0_39, %c0_40] : memref<1x128xf32, #tpu.memory_space<vmem>>, vector<1x128xf32>
    %92 = vector.broadcast %91 : vector<1x128xf32> to vector<16x128xf32>
    %93 = arith.addf %90, %92 : vector<16x128xf32>
    %c0_41 = arith.constant 0 : index
    %c0_42 = arith.constant 0 : index
    %94 = vector.load %arg10[%c0_41, %c0_42] : memref<16x128xf32, #tpu.memory_space<vmem>>, vector<16x128xf32>
    tpu.vector_store %arg10[%c0_41, %c0_42], %93 {strides = array<i32>} : memref<16x128xf32, #tpu.memory_space<vmem>>, vector<16x128xf32>,
    return
  }
  func.func @transform_0(%arg0: i32) -> (i32, i32) {
    %c0_i32 = arith.constant 0 : i32
    %c0_i32_0 = arith.constant 0 : i32
    return %arg0, %c0_i32 : i32, i32
  }
  func.func @transform_1(%arg0: i32) -> (i32, i32) {
    %c0_i32 = arith.constant 0 : i32
    %c0_i32_0 = arith.constant 0 : i32
    %c0_i32_1 = arith.constant 0 : i32
    return %c0_i32, %c0_i32_0 : i32, i32
  }
  func.func @transform_2(%arg0: i32) -> (i32, i32) {
    %c0_i32 = arith.constant 0 : i32
    %c0_i32_0 = arith.constant 0 : i32
    %c0_i32_1 = arith.constant 0 : i32
    return %c0_i32, %c0_i32_0 : i32, i32
  }
  func.func @transform_9(%arg0: i32) -> (i32, i32) {
    %c0_i32 = arith.constant 0 : i32
    %c0_i32_0 = arith.constant 0 : i32
    return %arg0, %c0_i32 : i32, i32
  }
}

</mosaic_0001>

<llo_original>
// kernel: audio_classifier_forward.1
$region0: #{audio_classifier_forward.1}
  #allocation0 [shape = 'u32[]', space=smem, size = 0x4, offset = 0x4, fixed_abs, tag = 'smem constant byte address 0x4 - core index']
  #allocation1 [shape = 'u32[72,128]{1,0:T(1,128)}', space=vmem, size = 0x9000, scoped, tag = 'internal scratch']
  #allocation2 [shape = 'bf16[256,256]{1,0:T(8,128)(2,1)}', space=vmem, size = 0x20000, scoped, tag = 'scratch operand']
  #allocation3 [shape = 'f32[1,256]{1,0:T(1,128)}', space=vmem, size = 0x400, scoped, tag = 'scratch operand']
  #allocation4 [shape = 'bf16[256,256]{1,0:T(8,128)(2,1)}', space=vmem, size = 0x20000, scoped, tag = 'scratch operand']
  #allocation5 [shape = 'f32[1,256]{1,0:T(1,128)}', space=vmem, size = 0x400, scoped, tag = 'scratch operand']
  #allocation6 [shape = 'bf16[256,128]{1,0:T(8,128)(2,1)}', space=vmem, size = 0x10000, scoped, tag = 'scratch operand']
  #allocation7 [shape = 'f32[1,128]{1,0:T(1,128)}', space=vmem, size = 0x200, scoped, tag = 'scratch operand']
  #allocation8 [shape = 's32[6]{0}', space=sflag, size = 0x18, scoped, tag = 'scratch operand']
  #allocation16 [shape = 's32[]', space=sflag, size = 0x4, offset = 0, fixed_abs, tag = 'sflag constant byte address 0x0 - dummy sync flag']
  #allocation17 [shape = 's32[]', space=sflag, size = 0x4, offset = 0, fixed_abs, tag = 'sflag constant byte address 0x0 - dummy sync flag']
  #allocation18 [shape = 'u32[]', space=smem, size = 0x4, offset = 0x44, fixed_abs, tag = 'smem constant byte address 0x44 - assertion arg 0']
  #allocation19 [shape = 'u32[]', space=smem, size = 0x4, offset = 0x48, fixed_abs, tag = 'smem constant byte address 0x48 - assertion arg 1']
  #allocation20 [shape = 's32[]', space=sflag, size = 0x4, offset = 0, fixed_abs, tag = 'sflag constant byte address 0x0 - dummy sync flag']
  #allocation21 [shape = 's32[]', space=sflag, size = 0x4, offset = 0, fixed_abs, tag = 'sflag constant byte address 0x0 - dummy sync flag']
  #allocation22 [shape = 's32[]', space=sflag, size = 0x4, offset = 0, fixed_abs, tag = 'sflag constant byte address 0x0 - dummy sync flag']
  #allocation23 [shape = 's32[]', space=sflag, size = 0x4, offset = 0, fixed_abs, tag = 'sflag constant byte address 0x0 - dummy sync flag']
  #allocation24 [shape = 's32[]', space=sflag, size = 0x4, offset = 0, fixed_abs, tag = 'sflag constant byte address 0x0 - dummy sync flag']
  #allocation25 [shape = 's32[]', space=sflag, size = 0x4, offset = 0, fixed_abs, tag = 'sflag constant byte address 0x0 - dummy sync flag']
  #allocation26 [shape = 's32[]', space=sflag, size = 0x4, offset = 0, fixed_abs, tag = 'sflag constant byte address 0x0 - dummy sync flag']
  %s0 = inlined_call_operand.hbm [shape: f32[8,256], index: 0, kind: input, shape index: {}]
  %s1 = inlined_call_operand.hbm [shape: bf16[256,256], index: 1, kind: input, shape index: {}]
  %s2 = inlined_call_operand.hbm [shape: f32[1,256], index: 2, kind: input, shape index: {}]
  %s3 = inlined_call_operand.hbm [shape: bf16[256,256], index: 3, kind: input, shape index: {}]
  %s4 = inlined_call_operand.vmem [shape: f32[1,256], index: 4, kind: input, shape index: {}]
  %s5 = inlined_call_operand.hbm [shape: bf16[256,256], index: 5, kind: input, shape index: {}]
  %s6 = inlined_call_operand.vmem [shape: f32[1,256], index: 6, kind: input, shape index: {}]
  %s7 = inlined_call_operand.hbm [shape: bf16[256,128], index: 7, kind: input, shape index: {}]
  %s8 = inlined_call_operand.vmem [shape: f32[1,128], index: 8, kind: input, shape index: {}]
  %s9 = inlined_call_operand.hbm [shape: f32[8,128], index: 9, kind: output, shape index: {}]
  %s10 = sld [smem:[#allocation0]]
  $region136: #{audio_classifier_forward.1} parent=0
    _
  %s12 = ssub.s32 1, %s10
  %s13 = scalar_select 0, %s12, %s10
  $region1: #{audio_classifier_forward.1} parent=0
    #allocation9 [shape = 'u8[16384]{0}', space=vmem, size = 0x4000, scoped, tag = 'input window, operand 0, single buffered']
    #allocation10 [shape = 's32[1]{0}', space=sflag, size = 0x4, scoped, tag = 'scoped memory for audio_classifier_forward.1']
    #allocation11 [shape = 's32[1]{0}', space=sflag, size = 0x4, scoped, tag = 'scoped memory for audio_classifier_forward.1']
    #allocation12 [shape = 'u8[131072]{0}', space=vmem, size = 0x20000, scoped, tag = 'input window, operand 1, single buffered']
    #allocation13 [shape = 's32[1]{0}', space=sflag, size = 0x4, scoped, tag = 'scoped memory for audio_classifier_forward.1']
    #allocation14 [shape = 'u8[1024]{0}', space=vmem, size = 0x400, scoped, tag = 'input window, operand 2, single buffered']
    #allocation15 [shape = 'u8[8192]{0}', space=vmem, size = 0x2000, scoped, tag = 'output window, operand 0, single buffered']
    %14 = vsyncpa [#allocation10], 0
    %15 = vsyncpa [#allocation13], 0
    %16 = vsyncpa [#allocation11], 0
    // Predicated region
    $region2: #{audio_classifier_forward.1} parent=1 // pred_check
      _
    $region3: #{audio_classifier_forward.1} parent=1 // pred_check_branch
      %18 = sbr.rel (0) target = $region5
    $region4: #{audio_classifier_forward.1} parent=1 // pred_region
      %20 = vsyncadd [#allocation10], 256
      %s21 = sshll.u32 %s0, 4
      %s22 = int_to_ptr.hbm [resolvable:$true] %s21
      %s23 = sshll.u32 [#allocation9], 4
      %s24 = int_to_ptr.vmem [resolvable:$true] %s23
      %29 = dma.hbm_to_vmem [thread:$0]  %s22, 256, %s24, [#allocation10], 256, 256, 16
    $region5: #{audio_classifier_forward.1} parent=1 // pred_fallthru
      _
    // Predicated region
    $region6: #{audio_classifier_forward.1} parent=1 // pred_check
      _
    $region7: #{audio_classifier_forward.1} parent=1 // pred_check_branch
      %31 = sbr.rel (0) target = $region9
    $region8: #{audio_classifier_forward.1} parent=1 // pred_region
      %33 = vsyncadd [#allocation13], 0
      %s34 = sshll.u32 %s1, 4
      %s35 = int_to_ptr.hbm [resolvable:$true] %s34
      %s36 = sshll.u32 [#allocation12], 4
      %s37 = int_to_ptr.vmem [resolvable:$true] %s36
      %42 = dma.hbm_to_vmem [thread:$0]  %s35, 4096, %s37, [#allocation13], 128, 128, 8
    $region9: #{audio_classifier_forward.1} parent=1 // pred_fallthru
      _
    // Predicated region
    $region10: #{audio_classifier_forward.1} parent=1 // pred_check
      _
    $region11: #{audio_classifier_forward.1} parent=1 // pred_check_branch
      %44 = sbr.rel (0) target = $region13
    $region12: #{audio_classifier_forward.1} parent=1 // pred_region
      %46 = vsyncadd [#allocation13], 0
      %s48 = sshll.u32 %s2, 4
      %s49 = int_to_ptr.hbm [resolvable:$true] %s48
      %s50 = sshll.u32 [#allocation14], 4
      %s51 = int_to_ptr.vmem [resolvable:$true] %s50
      %53 = dma.hbm_to_vmem [thread:$0]  %s49, 32, %s51, [#allocation13]
    $region13: #{audio_classifier_forward.1} parent=1 // pred_fallthru
      _
    // Predicated region
    $region14: #{audio_classifier_forward.1} parent=1 // pred_check
      _
    $region15: #{audio_classifier_forward.1} parent=1 // pred_check_branch
      %55 = sbr.rel (0) target = $region17
    $region16: #{audio_classifier_forward.1} parent=1 // pred_region
      %57 = dma.done [#allocation10], 512
    $region17: #{audio_classifier_forward.1} parent=1 // pred_fallthru
      _
    // Predicated region
    $region18: #{audio_classifier_forward.1} parent=1 // pred_check
      _
    $region19: #{audio_classifier_forward.1} parent=1 // pred_check_branch
      %59 = sbr.rel (0) target = $region21
    $region20: #{audio_classifier_forward.1} parent=1 // pred_region
      %61 = dma.done [#allocation13], 4096
    $region21: #{audio_classifier_forward.1} parent=1 // pred_fallthru
      _
    // Predicated region
    $region22: #{audio_classifier_forward.1} parent=1 // pred_check
      _
    $region23: #{audio_classifier_forward.1} parent=1 // pred_check_branch
      %63 = sbr.rel (0) target = $region25
    $region24: #{audio_classifier_forward.1} parent=1 // pred_region
      %65 = dma.done [#allocation13], 32
    $region25: #{audio_classifier_forward.1} parent=1 // pred_fallthru
      _
    // Predicated region
    $region26: #{audio_classifier_forward.1} parent=1 // pred_check
      _
    $region27: #{audio_classifier_forward.1} parent=1 // pred_check_branch
      %67 = sbr.rel target = $region29
    $region28: #{audio_classifier_forward.1} parent=1 // pred_region
      %68 = sst [smem:[#allocation18]] [#allocation17]
      %69 = sst [smem:[#allocation19]] [#allocation16]
    $region29: #{audio_classifier_forward.1} parent=1 // pred_fallthru
      _
    %71 = shalt.err (0)
    %s73 = sshll.u32 %s3, 4
    %s74 = int_to_ptr.hbm [resolvable:$true] %s73
    %s75 = sshll.u32 [#allocation2], 4
    %s76 = int_to_ptr.vmem [resolvable:$true] %s75
    %78 = dma.hbm_to_vmem [thread:$0]  %s74, 4096, %s76, [#allocation8]
    %s79 = scalar_lea.sflag [#allocation8], 1
    // Predicated region
    $region30: #{audio_classifier_forward.1} parent=1 // pred_check
      _
    $region31: #{audio_classifier_forward.1} parent=1 // pred_check_branch
      %81 = sbr.rel target = $region33
    $region32: #{audio_classifier_forward.1} parent=1 // pred_region
      // Predicated region
      $region45: #{audio_classifier_forward.1} parent=32 // pred_check
        _
      $region46: #{audio_classifier_forward.1} parent=32 // pred_check_branch
        %97 = sbr.rel (0) target = $region48
      $region47: #{audio_classifier_forward.1} parent=32 // pred_region
        %s99 = ssub.s32 4, 1
        loop: start=0, step=1, limit=1
        $region49: #{audio_classifier_forward.1} parent=47 // loop_pre_header
          _
        $region50: #{audio_classifier_forward.1} parent=47 // loop_header
          %s101 = sphi 0, %s105
          %p102 = scmp.ge.s32.totalorder %s101, 1
          %s106 = sphi %s4, %s4
          %s107 = sphi [#allocation3], [#allocation3]
        $region51: #{audio_classifier_forward.1} parent=47 // loop_header_branch
          %104 = sbr.rel (%p102) target = $region55
        $region52: #{audio_classifier_forward.1} parent=47 // loop_body
          %v108 = vld [vmem:[%s106] sm:%s99]
          %109 = vst [vmem:[%s107] sm:%s99] %v108
        $region53: #{audio_classifier_forward.1} parent=47 // loop_footer
          %s105 = sadd.s32 1, %s101
        $region54: #{audio_classifier_forward.1} parent=47 // loop_footer_branch
          %100 = sbr.rel target = $region50
        $region55: #{audio_classifier_forward.1} parent=47 // loop_exit
          _
      $region48: #{audio_classifier_forward.1} parent=32 // pred_fallthru
        _
    $region33: #{audio_classifier_forward.1} parent=1 // pred_fallthru
      _
    // Predicated region
    $region34: #{audio_classifier_forward.1} parent=1 // pred_check
      _
    $region35: #{audio_classifier_forward.1} parent=1 // pred_check_branch
      %83 = sbr.rel (0) target = $region37
    $region36: #{audio_classifier_forward.1} parent=1 // pred_region
      %s85 = ssub.s32 4, 1
      loop: start=0, step=1, limit=1
      $region38: #{audio_classifier_forward.1} parent=36 // loop_pre_header
        _
      $region39: #{audio_classifier_forward.1} parent=36 // loop_header
        %s87 = sphi 0, %s91
        %p88 = scmp.ge.s32.totalorder %s87, 1
        %s92 = sphi %s4, %s4
        %s93 = sphi [#allocation3], [#allocation3]
      $region40: #{audio_classifier_forward.1} parent=36 // loop_header_branch
        %90 = sbr.rel (%p88) target = $region44
      $region41: #{audio_classifier_forward.1} parent=36 // loop_body
        %v94 = vld [vmem:[%s92] sm:%s85]
        %95 = vst [vmem:[%s93] sm:%s85] %v94
      $region42: #{audio_classifier_forward.1} parent=36 // loop_footer
        %s91 = sadd.s32 1, %s87
      $region43: #{audio_classifier_forward.1} parent=36 // loop_footer_branch
        %86 = sbr.rel target = $region39
      $region44: #{audio_classifier_forward.1} parent=36 // loop_exit
        _
    $region37: #{audio_classifier_forward.1} parent=1 // pred_fallthru
      _
    // Predicated region
    $region56: #{audio_classifier_forward.1} parent=1 // pred_check
      _
    $region57: #{audio_classifier_forward.1} parent=1 // pred_check_branch
      %112 = sbr.rel (0) target = $region59
    $region58: #{audio_classifier_forward.1} parent=1 // pred_region
      %113 = vsyncadd %s79, 32
    $region59: #{audio_classifier_forward.1} parent=1 // pred_fallthru
      _
    %s114 = scalar_lea.sflag [#allocation8], 2
    // Predicated region
    $region60: #{audio_classifier_forward.1} parent=1 // pred_check
      _
    $region61: #{audio_classifier_forward.1} parent=1 // pred_check_branch
      %116 = sbr.rel target = $region63
    $region62: #{audio_classifier_forward.1} parent=1 // pred_region
      %117 = sst [smem:[#allocation18]] [#allocation22]
      %118 = sst [smem:[#allocation19]] [#allocation21]
    $region63: #{audio_classifier_forward.1} parent=1 // pred_fallthru
      _
    %120 = shalt.err (0)
    %s122 = sshll.u32 %s5, 4
    %s123 = int_to_ptr.hbm [resolvable:$true] %s122
    %s124 = sshll.u32 [#allocation4], 4
    %s125 = int_to_ptr.vmem [resolvable:$true] %s124
    %127 = dma.hbm_to_vmem [thread:$0]  %s123, 4096, %s125, %s114
    %s128 = scalar_lea.sflag [#allocation8], 3
    // Predicated region
    $region64: #{audio_classifier_forward.1} parent=1 // pred_check
      _
    $region65: #{audio_classifier_forward.1} parent=1 // pred_check_branch
      %130 = sbr.rel target = $region67
    $region66: #{audio_classifier_forward.1} parent=1 // pred_region
      // Predicated region
      $region79: #{audio_classifier_forward.1} parent=66 // pred_check
        _
      $region80: #{audio_classifier_forward.1} parent=66 // pred_check_branch
        %146 = sbr.rel (0) target = $region82
      $region81: #{audio_classifier_forward.1} parent=66 // pred_region
        %s148 = ssub.s32 4, 1
        loop: start=0, step=1, limit=1
        $region83: #{audio_classifier_forward.1} parent=81 // loop_pre_header
          _
        $region84: #{audio_classifier_forward.1} parent=81 // loop_header
          %s150 = sphi 0, %s154
          %p151 = scmp.ge.s32.totalorder %s150, 1
          %s155 = sphi %s6, %s6
          %s156 = sphi [#allocation5], [#allocation5]
        $region85: #{audio_classifier_forward.1} parent=81 // loop_header_branch
          %153 = sbr.rel (%p151) target = $region89
        $region86: #{audio_classifier_forward.1} parent=81 // loop_body
          %v157 = vld [vmem:[%s155] sm:%s148]
          %158 = vst [vmem:[%s156] sm:%s148] %v157
        $region87: #{audio_classifier_forward.1} parent=81 // loop_footer
          %s154 = sadd.s32 1, %s150
        $region88: #{audio_classifier_forward.1} parent=81 // loop_footer_branch
          %149 = sbr.rel target = $region84
        $region89: #{audio_classifier_forward.1} parent=81 // loop_exit
          _
      $region82: #{audio_classifier_forward.1} parent=66 // pred_fallthru
        _
    $region67: #{audio_classifier_forward.1} parent=1 // pred_fallthru
      _
    // Predicated region
    $region68: #{audio_classifier_forward.1} parent=1 // pred_check
      _
    $region69: #{audio_classifier_forward.1} parent=1 // pred_check_branch
      %132 = sbr.rel (0) target = $region71
    $region70: #{audio_classifier_forward.1} parent=1 // pred_region
      %s134 = ssub.s32 4, 1
      loop: start=0, step=1, limit=1
      $region72: #{audio_classifier_forward.1} parent=70 // loop_pre_header
        _
      $region73: #{audio_classifier_forward.1} parent=70 // loop_header
        %s136 = sphi 0, %s140
        %p137 = scmp.ge.s32.totalorder %s136, 1
        %s141 = sphi %s6, %s6
        %s142 = sphi [#allocation5], [#allocation5]
      $region74: #{audio_classifier_forward.1} parent=70 // loop_header_branch
        %139 = sbr.rel (%p137) target = $region78
      $region75: #{audio_classifier_forward.1} parent=70 // loop_body
        %v143 = vld [vmem:[%s141] sm:%s134]
        %144 = vst [vmem:[%s142] sm:%s134] %v143
      $region76: #{audio_classifier_forward.1} parent=70 // loop_footer
        %s140 = sadd.s32 1, %s136
      $region77: #{audio_classifier_forward.1} parent=70 // loop_footer_branch
        %135 = sbr.rel target = $region73
      $region78: #{audio_classifier_forward.1} parent=70 // loop_exit
        _
    $region71: #{audio_classifier_forward.1} parent=1 // pred_fallthru
      _
    // Predicated region
    $region90: #{audio_classifier_forward.1} parent=1 // pred_check
      _
    $region91: #{audio_classifier_forward.1} parent=1 // pred_check_branch
      %161 = sbr.rel (0) target = $region93
    $region92: #{audio_classifier_forward.1} parent=1 // pred_region
      %162 = vsyncadd %s128, 32
    $region93: #{audio_classifier_forward.1} parent=1 // pred_fallthru
      _
    %s163 = scalar_lea.sflag [#allocation8], 4
    // Predicated region
    $region94: #{audio_classifier_forward.1} parent=1 // pred_check
      _
    $region95: #{audio_classifier_forward.1} parent=1 // pred_check_branch
      %165 = sbr.rel target = $region97
    $region96: #{audio_classifier_forward.1} parent=1 // pred_region
      %166 = sst [smem:[#allocation18]] [#allocation25]
      %167 = sst [smem:[#allocation19]] [#allocation24]
    $region97: #{audio_classifier_forward.1} parent=1 // pred_fallthru
      _
    %169 = shalt.err (0)
    %s171 = sshll.u32 %s7, 4
    %s172 = int_to_ptr.hbm [resolvable:$true] %s171
    %s173 = sshll.u32 [#allocation6], 4
    %s174 = int_to_ptr.vmem [resolvable:$true] %s173
    %176 = dma.hbm_to_vmem [thread:$0]  %s172, 2048, %s174, %s163
    %s177 = scalar_lea.sflag [#allocation8], 5
    // Predicated region
    $region98: #{audio_classifier_forward.1} parent=1 // pred_check
      _
    $region99: #{audio_classifier_forward.1} parent=1 // pred_check_branch
      %179 = sbr.rel target = $region101
    $region100: #{audio_classifier_forward.1} parent=1 // pred_region
      // Predicated region
      $region113: #{audio_classifier_forward.1} parent=100 // pred_check
        _
      $region114: #{audio_classifier_forward.1} parent=100 // pred_check_branch
        %195 = sbr.rel (0) target = $region116
      $region115: #{audio_classifier_forward.1} parent=100 // pred_region
        %s197 = ssub.s32 2, 1
        loop: start=0, step=1, limit=1
        $region117: #{audio_classifier_forward.1} parent=115 // loop_pre_header
          _
        $region118: #{audio_classifier_forward.1} parent=115 // loop_header
          %s199 = sphi 0, %s203
          %p200 = scmp.ge.s32.totalorder %s199, 1
          %s204 = sphi %s8, %s8
          %s205 = sphi [#allocation7], [#allocation7]
        $region119: #{audio_classifier_forward.1} parent=115 // loop_header_branch
          %202 = sbr.rel (%p200) target = $region123
        $region120: #{audio_classifier_forward.1} parent=115 // loop_body
          %v206 = vld [vmem:[%s204] sm:%s197]
          %207 = vst [vmem:[%s205] sm:%s197] %v206
        $region121: #{audio_classifier_forward.1} parent=115 // loop_footer
          %s203 = sadd.s32 1, %s199
        $region122: #{audio_classifier_forward.1} parent=115 // loop_footer_branch
          %198 = sbr.rel target = $region118
        $region123: #{audio_classifier_forward.1} parent=115 // loop_exit
          _
      $region116: #{audio_classifier_forward.1} parent=100 // pred_fallthru
        _
    $region101: #{audio_classifier_forward.1} parent=1 // pred_fallthru
      _
    // Predicated region
    $region102: #{audio_classifier_forward.1} parent=1 // pred_check
      _
    $region103: #{audio_classifier_forward.1} parent=1 // pred_check_branch
      %181 = sbr.rel (0) target = $region105
    $region104: #{audio_classifier_forward.1} parent=1 // pred_region
      %s183 = ssub.s32 2, 1
      loop: start=0, step=1, limit=1
      $region106: #{audio_classifier_forward.1} parent=104 // loop_pre_header
        _
      $region107: #{audio_classifier_forward.1} parent=104 // loop_header
        %s185 = sphi 0, %s189
        %p186 = scmp.ge.s32.totalorder %s185, 1
        %s190 = sphi %s8, %s8
        %s191 = sphi [#allocation7], [#allocation7]
      $region108: #{audio_classifier_forward.1} parent=104 // loop_header_branch
        %188 = sbr.rel (%p186) target = $region112
      $region109: #{audio_classifier_forward.1} parent=104 // loop_body
        %v192 = vld [vmem:[%s190] sm:%s183]
        %193 = vst [vmem:[%s191] sm:%s183] %v192
      $region110: #{audio_classifier_forward.1} parent=104 // loop_footer
        %s189 = sadd.s32 1, %s185
      $region111: #{audio_classifier_forward.1} parent=104 // loop_footer_branch
        %184 = sbr.rel target = $region107
      $region112: #{audio_classifier_forward.1} parent=104 // loop_exit
        _
    $region105: #{audio_classifier_forward.1} parent=1 // pred_fallthru
      _
    // Predicated region
    $region124: #{audio_classifier_forward.1} parent=1 // pred_check
      _
    $region125: #{audio_classifier_forward.1} parent=1 // pred_check_branch
      %210 = sbr.rel (0) target = $region127
    $region126: #{audio_classifier_forward.1} parent=1 // pred_region
      %211 = vsyncadd %s177, 16
    $region127: #{audio_classifier_forward.1} parent=1 // pred_fallthru
      _
    %v212 = vld [vmem:[#allocation9] sm:$0xff]
    %v213 = vld [vmem:[#allocation9 + $0x8] sm:$0xff]
    %v214 = vld [vmem:[#allocation9 + $0x10] sm:$0xff]
    %v215 = vld [vmem:[#allocation9 + $0x18] sm:$0xff]
    %v216 = vpack.c.bf16 %v214, %v212
    %v217 = vpack.c.bf16 %v215, %v213
    %v218 = vld [vmem:[#allocation12] sm:$0xff]
    %v219 = vld [vmem:[#allocation12 + $0x8] sm:$0xff]
    %v220 = vld [vmem:[#allocation12 + $0x10] sm:$0xff]
    %v221 = vld [vmem:[#allocation12 + $0x18] sm:$0xff]
    %v222 = vld [vmem:[#allocation12 + $0x20] sm:$0xff]
    %v223 = vld [vmem:[#allocation12 + $0x28] sm:$0xff]
    %v224 = vld [vmem:[#allocation12 + $0x30] sm:$0xff]
    %v225 = vld [vmem:[#allocation12 + $0x38] sm:$0xff]
    %v226 = vld [vmem:[#allocation12 + $0x40] sm:$0xff]
    %v227 = vld [vmem:[#allocation12 + $0x48] sm:$0xff]
    %v228 = vld [vmem:[#allocation12 + $0x50] sm:$0xff]
    %v229 = vld [vmem:[#allocation12 + $0x58] sm:$0xff]
    %v230 = vld [vmem:[#allocation12 + $0x60] sm:$0xff]
    %v231 = vld [vmem:[#allocation12 + $0x68] sm:$0xff]
    %v232 = vld [vmem:[#allocation12 + $0x70] sm:$0xff]
    %v233 = vld [vmem:[#allocation12 + $0x78] sm:$0xff]
    %v234 = vld [vmem:[#allocation12 + $0x80] sm:$0xff]
    %v235 = vld [vmem:[#allocation12 + $0x88] sm:$0xff]
    %v236 = vld [vmem:[#allocation12 + $0x90] sm:$0xff]
    %v237 = vld [vmem:[#allocation12 + $0x98] sm:$0xff]
    %v238 = vld [vmem:[#allocation12 + $0xa0] sm:$0xff]
    %v239 = vld [vmem:[#allocation12 + $0xa8] sm:$0xff]
    %v240 = vld [vmem:[#allocation12 + $0xb0] sm:$0xff]
    %v241 = vld [vmem:[#allocation12 + $0xb8] sm:$0xff]
    %v242 = vld [vmem:[#allocation12 + $0xc0] sm:$0xff]
    %v243 = vld [vmem:[#allocation12 + $0xc8] sm:$0xff]
    %v244 = vld [vmem:[#allocation12 + $0xd0] sm:$0xff]
    %v245 = vld [vmem:[#allocation12 + $0xd8] sm:$0xff]
    %v246 = vld [vmem:[#allocation12 + $0xe0] sm:$0xff]
    %v247 = vld [vmem:[#allocation12 + $0xe8] sm:$0xff]
    %v248 = vld [vmem:[#allocation12 + $0xf0] sm:$0xff]
    %v249 = vld [vmem:[#allocation12 + $0xf8] sm:$0xff]
    %v250 = vld [vmem:[#allocation14] sm:$0x3]
    %v252 = vperm.slane %v250, 0
    %v253 = vperm.slane %v250, 1
    %v288 = vunpack.c.l.b16 %v218
    %v289 = vunpack.c.h.b16 %v218
    %v290 = vunpack.c.l.b16 %v219
    %v291 = vunpack.c.h.b16 %v219
    %v292 = vunpack.c.l.b16 %v220
    %v293 = vunpack.c.h.b16 %v220
    %v294 = vunpack.c.l.b16 %v221
    %v295 = vunpack.c.h.b16 %v221
    %v296 = vunpack.c.l.b16 %v222
    %v297 = vunpack.c.h.b16 %v222
    %v298 = vunpack.c.l.b16 %v223
    %v299 = vunpack.c.h.b16 %v223
    %v300 = vunpack.c.l.b16 %v224
    %v301 = vunpack.c.h.b16 %v224
    %v302 = vunpack.c.l.b16 %v225
    %v303 = vunpack.c.h.b16 %v225
    %v304 = vunpack.c.l.b16 %v226
    %v305 = vunpack.c.h.b16 %v226
    %v306 = vunpack.c.l.b16 %v227
    %v307 = vunpack.c.h.b16 %v227
    %v308 = vunpack.c.l.b16 %v228
    %v309 = vunpack.c.h.b16 %v228
    %v310 = vunpack.c.l.b16 %v229
    %v311 = vunpack.c.h.b16 %v229
    %v312 = vunpack.c.l.b16 %v230
    %v313 = vunpack.c.h.b16 %v230
    %v314 = vunpack.c.l.b16 %v231
    %v315 = vunpack.c.h.b16 %v231
    %v316 = vunpack.c.l.b16 %v232
    %v317 = vunpack.c.h.b16 %v232
    %v318 = vunpack.c.l.b16 %v233
    %v319 = vunpack.c.h.b16 %v233
    %v320 = vunpack.c.l.b16 %v234
    %v321 = vunpack.c.h.b16 %v234
    %v322 = vunpack.c.l.b16 %v235
    %v323 = vunpack.c.h.b16 %v235
    %v324 = vunpack.c.l.b16 %v236
    %v325 = vunpack.c.h.b16 %v236
    %v326 = vunpack.c.l.b16 %v237
    %v327 = vunpack.c.h.b16 %v237
    %v328 = vunpack.c.l.b16 %v238
    %v329 = vunpack.c.h.b16 %v238
    %v330 = vunpack.c.l.b16 %v239
    %v331 = vunpack.c.h.b16 %v239
    %v332 = vunpack.c.l.b16 %v240
    %v333 = vunpack.c.h.b16 %v240
    %v334 = vunpack.c.l.b16 %v241
    %v335 = vunpack.c.h.b16 %v241
    %v336 = vunpack.c.l.b16 %v242
    %v337 = vunpack.c.h.b16 %v242
    %v338 = vunpack.c.l.b16 %v243
    %v339 = vunpack.c.h.b16 %v243
    %v340 = vunpack.c.l.b16 %v244
    %v341 = vunpack.c.h.b16 %v244
    %v342 = vunpack.c.l.b16 %v245
    %v343 = vunpack.c.h.b16 %v245
    %v344 = vunpack.c.l.b16 %v246
    %v345 = vunpack.c.h.b16 %v246
    %v346 = vunpack.c.l.b16 %v247
    %v347 = vunpack.c.h.b16 %v247
    %v348 = vunpack.c.l.b16 %v248
    %v349 = vunpack.c.h.b16 %v248
    %v350 = vunpack.c.l.b16 %v249
    %v351 = vunpack.c.h.b16 %v249
    %v352 = vpack.c.b16 %v290, %v288
    %v353 = vpack.c.b16 %v291, %v289
    %v354 = vpack.c.b16 %v294, %v292
    %v355 = vpack.c.b16 %v295, %v293
    %v356 = vpack.c.b16 %v298, %v296
    %v357 = vpack.c.b16 %v299, %v297
    %v358 = vpack.c.b16 %v302, %v300
    %v359 = vpack.c.b16 %v303, %v301
    %v360 = vpack.c.b16 %v306, %v304
    %v361 = vpack.c.b16 %v307, %v305
    %v362 = vpack.c.b16 %v310, %v308
    %v363 = vpack.c.b16 %v311, %v309
    %v364 = vpack.c.b16 %v314, %v312
    %v365 = vpack.c.b16 %v315, %v313
    %v366 = vpack.c.b16 %v318, %v316
    %v367 = vpack.c.b16 %v319, %v317
    %v368 = vpack.c.b16 %v322, %v320
    %v369 = vpack.c.b16 %v323, %v321
    %v370 = vpack.c.b16 %v326, %v324
    %v371 = vpack.c.b16 %v327, %v325
    %v372 = vpack.c.b16 %v330, %v328
    %v373 = vpack.c.b16 %v331, %v329
    %v374 = vpack.c.b16 %v334, %v332
    %v375 = vpack.c.b16 %v335, %v333
    %v376 = vpack.c.b16 %v338, %v336
    %v377 = vpack.c.b16 %v339, %v337
    %v378 = vpack.c.b16 %v342, %v340
    %v379 = vpack.c.b16 %v343, %v341
    %v380 = vpack.c.b16 %v346, %v344
    %v381 = vpack.c.b16 %v347, %v345
    %v382 = vpack.c.b16 %v350, %v348
    %v383 = vpack.c.b16 %v351, %v349
    %416 = vmatpush.bf16.msra.mxu0 %v366
    %417 = vmatpush.bf16.msra.mxu0 %v364
    %418 = vmatpush.bf16.msra.mxu0 %v362
    %419 = vmatpush.bf16.msra.mxu0 %v360
    %420 = vmatpush.bf16.msra.mxu0 %v358
    %421 = vmatpush.bf16.msra.mxu0 %v356
    %422 = vmatpush.bf16.msra.mxu0 %v354
    %423 = vmatpush.bf16.msra.mxu0 %v352
    %424 = vmatmul.bf16.gmra.mxu0 %v216
    %v425 = vpop.f32.mrf.mxu0
    %v426 = vadd.f32 %v252, %v425
    %v427 = vpop.f32.mrf.mxu0
    %v428 = vadd.f32 %v252, %v427
    %429 = vdwg.mxu0
    %430 = vmatpush.bf16.msra.mxu0 %v382
    %431 = vmatpush.bf16.msra.mxu0 %v380
    %432 = vmatpush.bf16.msra.mxu0 %v378
    %433 = vmatpush.bf16.msra.mxu0 %v376
    %434 = vmatpush.bf16.msra.mxu0 %v374
    %435 = vmatpush.bf16.msra.mxu0 %v372
    %436 = vmatpush.bf16.msra.mxu0 %v370
    %437 = vmatpush.bf16.msra.mxu0 %v368
    %438 = vmatmul.bf16.gmra.mxu0 %v217
    %v439 = vpop.f32.mrf.mxu0
    %v440 = vadd.f32 %v426, %v439
    %v441 = vpop.f32.mrf.mxu0
    %v442 = vadd.f32 %v428, %v441
    %443 = vdwg.mxu0
    %444 = vmatpush.bf16.msra.mxu0 %v367
    %445 = vmatpush.bf16.msra.mxu0 %v365
    %446 = vmatpush.bf16.msra.mxu0 %v363
    %447 = vmatpush.bf16.msra.mxu0 %v361
    %448 = vmatpush.bf16.msra.mxu0 %v359
    %449 = vmatpush.bf16.msra.mxu0 %v357
    %450 = vmatpush.bf16.msra.mxu0 %v355
    %451 = vmatpush.bf16.msra.mxu0 %v353
    %452 = vmatmul.bf16.gmra.mxu0 %v216
    %v453 = vpop.f32.mrf.mxu0
    %v454 = vadd.f32 %v253, %v453
    %v455 = vpop.f32.mrf.mxu0
    %v456 = vadd.f32 %v253, %v455
    %457 = vdwg.mxu0
    %458 = vmatpush.bf16.msra.mxu0 %v383
    %459 = vmatpush.bf16.msra.mxu0 %v381
    %460 = vmatpush.bf16.msra.mxu0 %v379
    %461 = vmatpush.bf16.msra.mxu0 %v377
    %462 = vmatpush.bf16.msra.mxu0 %v375
    %463 = vmatpush.bf16.msra.mxu0 %v373
    %464 = vmatpush.bf16.msra.mxu0 %v371
    %465 = vmatpush.bf16.msra.mxu0 %v369
    %466 = vmatmul.bf16.gmra.mxu0 %v217
    %v467 = vpop.f32.mrf.mxu0
    %v468 = vadd.f32 %v454, %v467
    %v469 = vpop.f32.mrf.mxu0
    %v470 = vadd.f32 %v456, %v469
    %471 = vdwg.mxu0
    %v472 = vmin.f32 %v440, 20.0
    %v473 = vmin.f32 %v468, 20.0
    %v474 = vmin.f32 %v442, 20.0
    %v475 = vmin.f32 %v470, 20.0
    %v476 = vmul.f32 %v472, 1.442695
    %v477 = vpow.pop %v476
    %v478 = vmul.f32 %v473, 1.442695
    %v479 = vpow.pop %v478
    %v480 = vmul.f32 %v474, 1.442695
    %v481 = vpow.pop %v480
    %v482 = vmul.f32 %v475, 1.442695
    %v483 = vpow.pop %v482
    %v484 = vadd.f32 %v477, 2.0
    %v485 = vadd.f32 %v479, 2.0
    %v486 = vadd.f32 %v481, 2.0
    %v487 = vadd.f32 %v483, 2.0
    %v488 = vmul.f32 %v477, %v484
    %v489 = vmul.f32 %v479, %v485
    %v490 = vmul.f32 %v481, %v486
    %v491 = vmul.f32 %v483, %v487
    %v492 = vadd.f32 %v488, 2.0
    %v493 = vadd.f32 %v489, 2.0
    %v494 = vadd.f32 %v490, 2.0
    %v495 = vadd.f32 %v491, 2.0
    %v496 = vrcp.pop %v492
    %v497 = vrcp.pop %v493
    %v498 = vrcp.pop %v494
    %v499 = vrcp.pop %v495
    %v500 = vmul.f32 %v488, %v496
    %v501 = vmul.f32 %v489, %v497
    %v502 = vmul.f32 %v490, %v498
    %v503 = vmul.f32 %v491, %v499
    %vm504 = vcmp.gt.f32.partialorder %v440, 20.0
    %vm505 = vcmp.gt.f32.partialorder %v468, 20.0
    %vm506 = vcmp.gt.f32.partialorder %v442, 20.0
    %vm507 = vcmp.gt.f32.partialorder %v470, 20.0
    %v508 = vsel %vm504, 1.0, %v500
    %v509 = vsel %vm505, 1.0, %v501
    %v510 = vsel %vm506, 1.0, %v502
    %v511 = vsel %vm507, 1.0, %v503
    %v512 = vmul.f32 %v440, %v508
    %v513 = vmul.f32 %v468, %v509
    %v514 = vmul.f32 %v442, %v510
    %v515 = vmul.f32 %v470, %v511
    %v516 = vpack.c.bf16 %v514, %v512
    %v517 = vpack.c.bf16 %v515, %v513
    %s518 = smul.u32 4, 32
    %s519 = smul.u32 %s518, 2
    %s520 = sshll.u32 %s519, 4
    %521 = dma.done [#allocation8], %s520
    %s522 = smul.u32 1, 2
    %s523 = sshll.u32 %s522, 4
    %524 = dma.done %s79, %s523
    %v525 = vld [vmem:[#allocation2] sm:$0xff]
    %v526 = vld [vmem:[#allocation2 + $0x8] sm:$0xff]
    %v527 = vld [vmem:[#allocation2 + $0x10] sm:$0xff]
    %v528 = vld [vmem:[#allocation2 + $0x18] sm:$0xff]
    %v529 = vld [vmem:[#allocation2 + $0x20] sm:$0xff]
    %v530 = vld [vmem:[#allocation2 + $0x28] sm:$0xff]
    %v531 = vld [vmem:[#allocation2 + $0x30] sm:$0xff]
    %v532 = vld [vmem:[#allocation2 + $0x38] sm:$0xff]
    %v533 = vld [vmem:[#allocation2 + $0x40] sm:$0xff]
    %v534 = vld [vmem:[#allocation2 + $0x48] sm:$0xff]
    %v535 = vld [vmem:[#allocation2 + $0x50] sm:$0xff]
    %v536 = vld [vmem:[#allocation2 + $0x58] sm:$0xff]
    %v537 = vld [vmem:[#allocation2 + $0x60] sm:$0xff]
    %v538 = vld [vmem:[#allocation2 + $0x68] sm:$0xff]
    %v539 = vld [vmem:[#allocation2 + $0x70] sm:$0xff]
    %v540 = vld [vmem:[#allocation2 + $0x78] sm:$0xff]
    %v541 = vld [vmem:[#allocation2 + $0x80] sm:$0xff]
    %v542 = vld [vmem:[#allocation2 + $0x88] sm:$0xff]
    %v543 = vld [vmem:[#allocation2 + $0x90] sm:$0xff]
    %v544 = vld [vmem:[#allocation2 + $0x98] sm:$0xff]
    %v545 = vld [vmem:[#allocation2 + $0xa0] sm:$0xff]
    %v546 = vld [vmem:[#allocation2 + $0xa8] sm:$0xff]
    %v547 = vld [vmem:[#allocation2 + $0xb0] sm:$0xff]
    %v548 = vld [vmem:[#allocation2 + $0xb8] sm:$0xff]
    %v549 = vld [vmem:[#allocation2 + $0xc0] sm:$0xff]
    %v550 = vld [vmem:[#allocation2 + $0xc8] sm:$0xff]
    %v551 = vld [vmem:[#allocation2 + $0xd0] sm:$0xff]
    %v552 = vld [vmem:[#allocation2 + $0xd8] sm:$0xff]
    %v553 = vld [vmem:[#allocation2 + $0xe0] sm:$0xff]
    %v554 = vld [vmem:[#allocation2 + $0xe8] sm:$0xff]
    %v555 = vld [vmem:[#allocation2 + $0xf0] sm:$0xff]
    %v556 = vld [vmem:[#allocation2 + $0xf8] sm:$0xff]
    %v557 = vld [vmem:[#allocation3] sm:$0x3]
    %v559 = vperm.slane %v557, 0
    %v560 = vperm.slane %v557, 1
    %v595 = vunpack.c.l.b16 %v525
    %v596 = vunpack.c.h.b16 %v525
    %v597 = vunpack.c.l.b16 %v526
    %v598 = vunpack.c.h.b16 %v526
    %v599 = vunpack.c.l.b16 %v527
    %v600 = vunpack.c.h.b16 %v527
    %v601 = vunpack.c.l.b16 %v528
    %v602 = vunpack.c.h.b16 %v528
    %v603 = vunpack.c.l.b16 %v529
    %v604 = vunpack.c.h.b16 %v529
    %v605 = vunpack.c.l.b16 %v530
    %v606 = vunpack.c.h.b16 %v530
    %v607 = vunpack.c.l.b16 %v531
    %v608 = vunpack.c.h.b16 %v531
    %v609 = vunpack.c.l.b16 %v532
    %v610 = vunpack.c.h.b16 %v532
    %v611 = vunpack.c.l.b16 %v533
    %v612 = vunpack.c.h.b16 %v533
    %v613 = vunpack.c.l.b16 %v534
    %v614 = vunpack.c.h.b16 %v534
    %v615 = vunpack.c.l.b16 %v535
    %v616 = vunpack.c.h.b16 %v535
    %v617 = vunpack.c.l.b16 %v536
    %v618 = vunpack.c.h.b16 %v536
    %v619 = vunpack.c.l.b16 %v537
    %v620 = vunpack.c.h.b16 %v537
    %v621 = vunpack.c.l.b16 %v538
    %v622 = vunpack.c.h.b16 %v538
    %v623 = vunpack.c.l.b16 %v539
    %v624 = vunpack.c.h.b16 %v539
    %v625 = vunpack.c.l.b16 %v540
    %v626 = vunpack.c.h.b16 %v540
    %v627 = vunpack.c.l.b16 %v541
    %v628 = vunpack.c.h.b16 %v541
    %v629 = vunpack.c.l.b16 %v542
    %v630 = vunpack.c.h.b16 %v542
    %v631 = vunpack.c.l.b16 %v543
    %v632 = vunpack.c.h.b16 %v543
    %v633 = vunpack.c.l.b16 %v544
    %v634 = vunpack.c.h.b16 %v544
    %v635 = vunpack.c.l.b16 %v545
    %v636 = vunpack.c.h.b16 %v545
    %v637 = vunpack.c.l.b16 %v546
    %v638 = vunpack.c.h.b16 %v546
    %v639 = vunpack.c.l.b16 %v547
    %v640 = vunpack.c.h.b16 %v547
    %v641 = vunpack.c.l.b16 %v548
    %v642 = vunpack.c.h.b16 %v548
    %v643 = vunpack.c.l.b16 %v549
    %v644 = vunpack.c.h.b16 %v549
    %v645 = vunpack.c.l.b16 %v550
    %v646 = vunpack.c.h.b16 %v550
    %v647 = vunpack.c.l.b16 %v551
    %v648 = vunpack.c.h.b16 %v551
    %v649 = vunpack.c.l.b16 %v552
    %v650 = vunpack.c.h.b16 %v552
    %v651 = vunpack.c.l.b16 %v553
    %v652 = vunpack.c.h.b16 %v553
    %v653 = vunpack.c.l.b16 %v554
    %v654 = vunpack.c.h.b16 %v554
    %v655 = vunpack.c.l.b16 %v555
    %v656 = vunpack.c.h.b16 %v555
    %v657 = vunpack.c.l.b16 %v556
    %v658 = vunpack.c.h.b16 %v556
    %v659 = vpack.c.b16 %v597, %v595
    %v660 = vpack.c.b16 %v598, %v596
    %v661 = vpack.c.b16 %v601, %v599
    %v662 = vpack.c.b16 %v602, %v600
    %v663 = vpack.c.b16 %v605, %v603
    %v664 = vpack.c.b16 %v606, %v604
    %v665 = vpack.c.b16 %v609, %v607
    %v666 = vpack.c.b16 %v610, %v608
    %v667 = vpack.c.b16 %v613, %v611
    %v668 = vpack.c.b16 %v614, %v612
    %v669 = vpack.c.b16 %v617, %v615
    %v670 = vpack.c.b16 %v618, %v616
    %v671 = vpack.c.b16 %v621, %v619
    %v672 = vpack.c.b16 %v622, %v620
    %v673 = vpack.c.b16 %v625, %v623
    %v674 = vpack.c.b16 %v626, %v624
    %v675 = vpack.c.b16 %v629, %v627
    %v676 = vpack.c.b16 %v630, %v628
    %v677 = vpack.c.b16 %v633, %v631
    %v678 = vpack.c.b16 %v634, %v632
    %v679 = vpack.c.b16 %v637, %v635
    %v680 = vpack.c.b16 %v638, %v636
    %v681 = vpack.c.b16 %v641, %v639
    %v682 = vpack.c.b16 %v642, %v640
    %v683 = vpack.c.b16 %v645, %v643
    %v684 = vpack.c.b16 %v646, %v644
    %v685 = vpack.c.b16 %v649, %v647
    %v686 = vpack.c.b16 %v650, %v648
    %v687 = vpack.c.b16 %v653, %v651
    %v688 = vpack.c.b16 %v654, %v652
    %v689 = vpack.c.b16 %v657, %v655
    %v690 = vpack.c.b16 %v658, %v656
    %723 = vmatpush.bf16.msra.mxu0 %v673
    %724 = vmatpush.bf16.msra.mxu0 %v671
    %725 = vmatpush.bf16.msra.mxu0 %v669
    %726 = vmatpush.bf16.msra.mxu0 %v667
    %727 = vmatpush.bf16.msra.mxu0 %v665
    %728 = vmatpush.bf16.msra.mxu0 %v663
    %729 = vmatpush.bf16.msra.mxu0 %v661
    %730 = vmatpush.bf16.msra.mxu0 %v659
    %731 = vmatmul.bf16.gmra.mxu0 %v516
    %v732 = vpop.f32.mrf.mxu0
    %v733 = vadd.f32 %v559, %v732
    %v734 = vpop.f32.mrf.mxu0
    %v735 = vadd.f32 %v559, %v734
    %736 = vdwg.mxu0
    %737 = vmatpush.bf16.msra.mxu0 %v689
    %738 = vmatpush.bf16.msra.mxu0 %v687
    %739 = vmatpush.bf16.msra.mxu0 %v685
    %740 = vmatpush.bf16.msra.mxu0 %v683
    %741 = vmatpush.bf16.msra.mxu0 %v681
    %742 = vmatpush.bf16.msra.mxu0 %v679
    %743 = vmatpush.bf16.msra.mxu0 %v677
    %744 = vmatpush.bf16.msra.mxu0 %v675
    %745 = vmatmul.bf16.gmra.mxu0 %v517
    %v746 = vpop.f32.mrf.mxu0
    %v747 = vadd.f32 %v733, %v746
    %v748 = vpop.f32.mrf.mxu0
    %v749 = vadd.f32 %v735, %v748
    %750 = vdwg.mxu0
    %751 = vmatpush.bf16.msra.mxu0 %v674
    %752 = vmatpush.bf16.msra.mxu0 %v672
    %753 = vmatpush.bf16.msra.mxu0 %v670
    %754 = vmatpush.bf16.msra.mxu0 %v668
    %755 = vmatpush.bf16.msra.mxu0 %v666
    %756 = vmatpush.bf16.msra.mxu0 %v664
    %757 = vmatpush.bf16.msra.mxu0 %v662
    %758 = vmatpush.bf16.msra.mxu0 %v660
    %759 = vmatmul.bf16.gmra.mxu0 %v516
    %v760 = vpop.f32.mrf.mxu0
    %v761 = vadd.f32 %v560, %v760
    %v762 = vpop.f32.mrf.mxu0
    %v763 = vadd.f32 %v560, %v762
    %764 = vdwg.mxu0
    %765 = vmatpush.bf16.msra.mxu0 %v690
    %766 = vmatpush.bf16.msra.mxu0 %v688
    %767 = vmatpush.bf16.msra.mxu0 %v686
    %768 = vmatpush.bf16.msra.mxu0 %v684
    %769 = vmatpush.bf16.msra.mxu0 %v682
    %770 = vmatpush.bf16.msra.mxu0 %v680
    %771 = vmatpush.bf16.msra.mxu0 %v678
    %772 = vmatpush.bf16.msra.mxu0 %v676
    %773 = vmatmul.bf16.gmra.mxu0 %v517
    %v774 = vpop.f32.mrf.mxu0
    %v775 = vadd.f32 %v761, %v774
    %v776 = vpop.f32.mrf.mxu0
    %v777 = vadd.f32 %v763, %v776
    %778 = vdwg.mxu0
    %v779 = vmin.f32 %v747, 20.0
    %v780 = vmin.f32 %v775, 20.0
    %v781 = vmin.f32 %v749, 20.0
    %v782 = vmin.f32 %v777, 20.0
    %v783 = vmul.f32 %v779, 1.442695
    %v784 = vpow.pop %v783
    %v785 = vmul.f32 %v780, 1.442695
    %v786 = vpow.pop %v785
    %v787 = vmul.f32 %v781, 1.442695
    %v788 = vpow.pop %v787
    %v789 = vmul.f32 %v782, 1.442695
    %v790 = vpow.pop %v789
    %v791 = vadd.f32 %v784, 2.0
    %v792 = vadd.f32 %v786, 2.0
    %v793 = vadd.f32 %v788, 2.0
    %v794 = vadd.f32 %v790, 2.0
    %v795 = vmul.f32 %v784, %v791
    %v796 = vmul.f32 %v786, %v792
    %v797 = vmul.f32 %v788, %v793
    %v798 = vmul.f32 %v790, %v794
    %v799 = vadd.f32 %v795, 2.0
    %v800 = vadd.f32 %v796, 2.0
    %v801 = vadd.f32 %v797, 2.0
    %v802 = vadd.f32 %v798, 2.0
    %v803 = vrcp.pop %v799
    %v804 = vrcp.pop %v800
    %v805 = vrcp.pop %v801
    %v806 = vrcp.pop %v802
    %v807 = vmul.f32 %v795, %v803
    %v808 = vmul.f32 %v796, %v804
    %v809 = vmul.f32 %v797, %v805
    %v810 = vmul.f32 %v798, %v806
    %vm811 = vcmp.gt.f32.partialorder %v747, 20.0
    %vm812 = vcmp.gt.f32.partialorder %v775, 20.0
    %vm813 = vcmp.gt.f32.partialorder %v749, 20.0
    %vm814 = vcmp.gt.f32.partialorder %v777, 20.0
    %v815 = vsel %vm811, 1.0, %v807
    %v816 = vsel %vm812, 1.0, %v808
    %v817 = vsel %vm813, 1.0, %v809
    %v818 = vsel %vm814, 1.0, %v810
    %v819 = vmul.f32 %v747, %v815
    %v820 = vmul.f32 %v775, %v816
    %v821 = vmul.f32 %v749, %v817
    %v822 = vmul.f32 %v777, %v818
    %v823 = vpack.c.bf16 %v821, %v819
    %v824 = vpack.c.bf16 %v822, %v820
    %s825 = sshll.u32 %s519, 4
    %826 = dma.done %s114, %s825
    %s827 = sshll.u32 %s522, 4
    %828 = dma.done %s128, %s827
    %v829 = vld [vmem:[#allocation4] sm:$0xff]
    %v830 = vld [vmem:[#allocation4 + $0x8] sm:$0xff]
    %v831 = vld [vmem:[#allocation4 + $0x10] sm:$0xff]
    %v832 = vld [vmem:[#allocation4 + $0x18] sm:$0xff]
    %v833 = vld [vmem:[#allocation4 + $0x20] sm:$0xff]
    %v834 = vld [vmem:[#allocation4 + $0x28] sm:$0xff]
    %v835 = vld [vmem:[#allocation4 + $0x30] sm:$0xff]
    %v836 = vld [vmem:[#allocation4 + $0x38] sm:$0xff]
    %v837 = vld [vmem:[#allocation4 + $0x40] sm:$0xff]
    %v838 = vld [vmem:[#allocation4 + $0x48] sm:$0xff]
    %v839 = vld [vmem:[#allocation4 + $0x50] sm:$0xff]
    %v840 = vld [vmem:[#allocation4 + $0x58] sm:$0xff]
    %v841 = vld [vmem:[#allocation4 + $0x60] sm:$0xff]
    %v842 = vld [vmem:[#allocation4 + $0x68] sm:$0xff]
    %v843 = vld [vmem:[#allocation4 + $0x70] sm:$0xff]
    %v844 = vld [vmem:[#allocation4 + $0x78] sm:$0xff]
    %v845 = vld [vmem:[#allocation4 + $0x80] sm:$0xff]
    %v846 = vld [vmem:[#allocation4 + $0x88] sm:$0xff]
    %v847 = vld [vmem:[#allocation4 + $0x90] sm:$0xff]
    %v848 = vld [vmem:[#allocation4 + $0x98] sm:$0xff]
    %v849 = vld [vmem:[#allocation4 + $0xa0] sm:$0xff]
    %v850 = vld [vmem:[#allocation4 + $0xa8] sm:$0xff]
    %v851 = vld [vmem:[#allocation4 + $0xb0] sm:$0xff]
    %v852 = vld [vmem:[#allocation4 + $0xb8] sm:$0xff]
    %v853 = vld [vmem:[#allocation4 + $0xc0] sm:$0xff]
    %v854 = vld [vmem:[#allocation4 + $0xc8] sm:$0xff]
    %v855 = vld [vmem:[#allocation4 + $0xd0] sm:$0xff]
    %v856 = vld [vmem:[#allocation4 + $0xd8] sm:$0xff]
    %v857 = vld [vmem:[#allocation4 + $0xe0] sm:$0xff]
    %v858 = vld [vmem:[#allocation4 + $0xe8] sm:$0xff]
    %v859 = vld [vmem:[#allocation4 + $0xf0] sm:$0xff]
    %v860 = vld [vmem:[#allocation4 + $0xf8] sm:$0xff]
    %v861 = vld [vmem:[#allocation5] sm:$0x3]
    %v863 = vperm.slane %v861, 0
    %v864 = vperm.slane %v861, 1
    %v899 = vunpack.c.l.b16 %v829
    %v900 = vunpack.c.h.b16 %v829
    %v901 = vunpack.c.l.b16 %v830
    %v902 = vunpack.c.h.b16 %v830
    %v903 = vunpack.c.l.b16 %v831
    %v904 = vunpack.c.h.b16 %v831
    %v905 = vunpack.c.l.b16 %v832
    %v906 = vunpack.c.h.b16 %v832
    %v907 = vunpack.c.l.b16 %v833
    %v908 = vunpack.c.h.b16 %v833
    %v909 = vunpack.c.l.b16 %v834
    %v910 = vunpack.c.h.b16 %v834
    %v911 = vunpack.c.l.b16 %v835
    %v912 = vunpack.c.h.b16 %v835
    %v913 = vunpack.c.l.b16 %v836
    %v914 = vunpack.c.h.b16 %v836
    %v915 = vunpack.c.l.b16 %v837
    %v916 = vunpack.c.h.b16 %v837
    %v917 = vunpack.c.l.b16 %v838
    %v918 = vunpack.c.h.b16 %v838
    %v919 = vunpack.c.l.b16 %v839
    %v920 = vunpack.c.h.b16 %v839
    %v921 = vunpack.c.l.b16 %v840
    %v922 = vunpack.c.h.b16 %v840
    %v923 = vunpack.c.l.b16 %v841
    %v924 = vunpack.c.h.b16 %v841
    %v925 = vunpack.c.l.b16 %v842
    %v926 = vunpack.c.h.b16 %v842
    %v927 = vunpack.c.l.b16 %v843
    %v928 = vunpack.c.h.b16 %v843
    %v929 = vunpack.c.l.b16 %v844
    %v930 = vunpack.c.h.b16 %v844
    %v931 = vunpack.c.l.b16 %v845
    %v932 = vunpack.c.h.b16 %v845
    %v933 = vunpack.c.l.b16 %v846
    %v934 = vunpack.c.h.b16 %v846
    %v935 = vunpack.c.l.b16 %v847
    %v936 = vunpack.c.h.b16 %v847
    %v937 = vunpack.c.l.b16 %v848
    %v938 = vunpack.c.h.b16 %v848
    %v939 = vunpack.c.l.b16 %v849
    %v940 = vunpack.c.h.b16 %v849
    %v941 = vunpack.c.l.b16 %v850
    %v942 = vunpack.c.h.b16 %v850
    %v943 = vunpack.c.l.b16 %v851
    %v944 = vunpack.c.h.b16 %v851
    %v945 = vunpack.c.l.b16 %v852
    %v946 = vunpack.c.h.b16 %v852
    %v947 = vunpack.c.l.b16 %v853
    %v948 = vunpack.c.h.b16 %v853
    %v949 = vunpack.c.l.b16 %v854
    %v950 = vunpack.c.h.b16 %v854
    %v951 = vunpack.c.l.b16 %v855
    %v952 = vunpack.c.h.b16 %v855
    %v953 = vunpack.c.l.b16 %v856
    %v954 = vunpack.c.h.b16 %v856
    %v955 = vunpack.c.l.b16 %v857
    %v956 = vunpack.c.h.b16 %v857
    %v957 = vunpack.c.l.b16 %v858
    %v958 = vunpack.c.h.b16 %v858
    %v959 = vunpack.c.l.b16 %v859
    %v960 = vunpack.c.h.b16 %v859
    %v961 = vunpack.c.l.b16 %v860
    %v962 = vunpack.c.h.b16 %v860
    %v963 = vpack.c.b16 %v901, %v899
    %v964 = vpack.c.b16 %v902, %v900
    %v965 = vpack.c.b16 %v905, %v903
    %v966 = vpack.c.b16 %v906, %v904
    %v967 = vpack.c.b16 %v909, %v907
    %v968 = vpack.c.b16 %v910, %v908
    %v969 = vpack.c.b16 %v913, %v911
    %v970 = vpack.c.b16 %v914, %v912
    %v971 = vpack.c.b16 %v917, %v915
    %v972 = vpack.c.b16 %v918, %v916
    %v973 = vpack.c.b16 %v921, %v919
    %v974 = vpack.c.b16 %v922, %v920
    %v975 = vpack.c.b16 %v925, %v923
    %v976 = vpack.c.b16 %v926, %v924
    %v977 = vpack.c.b16 %v929, %v927
    %v978 = vpack.c.b16 %v930, %v928
    %v979 = vpack.c.b16 %v933, %v931
    %v980 = vpack.c.b16 %v934, %v932
    %v981 = vpack.c.b16 %v937, %v935
    %v982 = vpack.c.b16 %v938, %v936
    %v983 = vpack.c.b16 %v941, %v939
    %v984 = vpack.c.b16 %v942, %v940
    %v985 = vpack.c.b16 %v945, %v943
    %v986 = vpack.c.b16 %v946, %v944
    %v987 = vpack.c.b16 %v949, %v947
    %v988 = vpack.c.b16 %v950, %v948
    %v989 = vpack.c.b16 %v953, %v951
    %v990 = vpack.c.b16 %v954, %v952
    %v991 = vpack.c.b16 %v957, %v955
    %v992 = vpack.c.b16 %v958, %v956
    %v993 = vpack.c.b16 %v961, %v959
    %v994 = vpack.c.b16 %v962, %v960
    %1027 = vmatpush.bf16.msra.mxu0 %v977
    %1028 = vmatpush.bf16.msra.mxu0 %v975
    %1029 = vmatpush.bf16.msra.mxu0 %v973
    %1030 = vmatpush.bf16.msra.mxu0 %v971
    %1031 = vmatpush.bf16.msra.mxu0 %v969
    %1032 = vmatpush.bf16.msra.mxu0 %v967
    %1033 = vmatpush.bf16.msra.mxu0 %v965
    %1034 = vmatpush.bf16.msra.mxu0 %v963
    %1035 = vmatmul.bf16.gmra.mxu0 %v823
    %v1036 = vpop.f32.mrf.mxu0
    %v1037 = vadd.f32 %v863, %v1036
    %v1038 = vpop.f32.mrf.mxu0
    %v1039 = vadd.f32 %v863, %v1038
    %1040 = vdwg.mxu0
    %1041 = vmatpush.bf16.msra.mxu0 %v993
    %1042 = vmatpush.bf16.msra.mxu0 %v991
    %1043 = vmatpush.bf16.msra.mxu0 %v989
    %1044 = vmatpush.bf16.msra.mxu0 %v987
    %1045 = vmatpush.bf16.msra.mxu0 %v985
    %1046 = vmatpush.bf16.msra.mxu0 %v983
    %1047 = vmatpush.bf16.msra.mxu0 %v981
    %1048 = vmatpush.bf16.msra.mxu0 %v979
    %1049 = vmatmul.bf16.gmra.mxu0 %v824
    %v1050 = vpop.f32.mrf.mxu0
    %v1051 = vadd.f32 %v1037, %v1050
    %v1052 = vpop.f32.mrf.mxu0
    %v1053 = vadd.f32 %v1039, %v1052
    %1054 = vdwg.mxu0
    %1055 = vmatpush.bf16.msra.mxu0 %v978
    %1056 = vmatpush.bf16.msra.mxu0 %v976
    %1057 = vmatpush.bf16.msra.mxu0 %v974
    %1058 = vmatpush.bf16.msra.mxu0 %v972
    %1059 = vmatpush.bf16.msra.mxu0 %v970
    %1060 = vmatpush.bf16.msra.mxu0 %v968
    %1061 = vmatpush.bf16.msra.mxu0 %v966
    %1062 = vmatpush.bf16.msra.mxu0 %v964
    %1063 = vmatmul.bf16.gmra.mxu0 %v823
    %v1064 = vpop.f32.mrf.mxu0
    %v1065 = vadd.f32 %v864, %v1064
    %v1066 = vpop.f32.mrf.mxu0
    %v1067 = vadd.f32 %v864, %v1066
    %1068 = vdwg.mxu0
    %1069 = vmatpush.bf16.msra.mxu0 %v994
    %1070 = vmatpush.bf16.msra.mxu0 %v992
    %1071 = vmatpush.bf16.msra.mxu0 %v990
    %1072 = vmatpush.bf16.msra.mxu0 %v988
    %1073 = vmatpush.bf16.msra.mxu0 %v986
    %1074 = vmatpush.bf16.msra.mxu0 %v984
    %1075 = vmatpush.bf16.msra.mxu0 %v982
    %1076 = vmatpush.bf16.msra.mxu0 %v980
    %1077 = vmatmul.bf16.gmra.mxu0 %v824
    %v1078 = vpop.f32.mrf.mxu0
    %v1079 = vadd.f32 %v1065, %v1078
    %v1080 = vpop.f32.mrf.mxu0
    %v1081 = vadd.f32 %v1067, %v1080
    %1082 = vdwg.mxu0
    %v1083 = vmin.f32 %v1051, 20.0
    %v1084 = vmin.f32 %v1079, 20.0
    %v1085 = vmin.f32 %v1053, 20.0
    %v1086 = vmin.f32 %v1081, 20.0
    %v1087 = vmul.f32 %v1083, 1.442695
    %v1088 = vpow.pop %v1087
    %v1089 = vmul.f32 %v1084, 1.442695
    %v1090 = vpow.pop %v1089
    %v1091 = vmul.f32 %v1085, 1.442695
    %v1092 = vpow.pop %v1091
    %v1093 = vmul.f32 %v1086, 1.442695
    %v1094 = vpow.pop %v1093
    %v1095 = vadd.f32 %v1088, 2.0
    %v1096 = vadd.f32 %v1090, 2.0
    %v1097 = vadd.f32 %v1092, 2.0
    %v1098 = vadd.f32 %v1094, 2.0
    %v1099 = vmul.f32 %v1088, %v1095
    %v1100 = vmul.f32 %v1090, %v1096
    %v1101 = vmul.f32 %v1092, %v1097
    %v1102 = vmul.f32 %v1094, %v1098
    %v1103 = vadd.f32 %v1099, 2.0
    %v1104 = vadd.f32 %v1100, 2.0
    %v1105 = vadd.f32 %v1101, 2.0
    %v1106 = vadd.f32 %v1102, 2.0
    %v1107 = vrcp.pop %v1103
    %v1108 = vrcp.pop %v1104
    %v1109 = vrcp.pop %v1105
    %v1110 = vrcp.pop %v1106
    %v1111 = vmul.f32 %v1099, %v1107
    %v1112 = vmul.f32 %v1100, %v1108
    %v1113 = vmul.f32 %v1101, %v1109
    %v1114 = vmul.f32 %v1102, %v1110
    %vm1115 = vcmp.gt.f32.partialorder %v1051, 20.0
    %vm1116 = vcmp.gt.f32.partialorder %v1079, 20.0
    %vm1117 = vcmp.gt.f32.partialorder %v1053, 20.0
    %vm1118 = vcmp.gt.f32.partialorder %v1081, 20.0
    %v1119 = vsel %vm1115, 1.0, %v1111
    %v1120 = vsel %vm1116, 1.0, %v1112
    %v1121 = vsel %vm1117, 1.0, %v1113
    %v1122 = vsel %vm1118, 1.0, %v1114
    %v1123 = vmul.f32 %v1051, %v1119
    %v1124 = vmul.f32 %v1079, %v1120
    %v1125 = vmul.f32 %v1053, %v1121
    %v1126 = vmul.f32 %v1081, %v1122
    %v1127 = vpack.c.bf16 %v1125, %v1123
    %v1128 = vpack.c.bf16 %v1126, %v1124
    %s1129 = smul.u32 %s518, 1
    %s1130 = sshll.u32 %s1129, 4
    %1131 = dma.done %s163, %s1130
    %s1132 = smul.u32 1, 1
    %s1133 = sshll.u32 %s1132, 4
    %1134 = dma.done %s177, %s1133
    %v1135 = vld [vmem:[#allocation6] sm:$0xf]
    %v1136 = vld [vmem:[#allocation6 + $0x4] sm:$0xf]
    %v1137 = vld [vmem:[#allocation6 + $0x8] sm:$0xf]
    %v1138 = vld [vmem:[#allocation6 + $0xc] sm:$0xf]
    %v1139 = vld [vmem:[#allocation6 + $0x10] sm:$0xf]
    %v1140 = vld [vmem:[#allocation6 + $0x14] sm:$0xf]
    %v1141 = vld [vmem:[#allocation6 + $0x18] sm:$0xf]
    %v1142 = vld [vmem:[#allocation6 + $0x1c] sm:$0xf]
    %v1143 = vld [vmem:[#allocation6 + $0x20] sm:$0xf]
    %v1144 = vld [vmem:[#allocation6 + $0x24] sm:$0xf]
    %v1145 = vld [vmem:[#allocation6 + $0x28] sm:$0xf]
    %v1146 = vld [vmem:[#allocation6 + $0x2c] sm:$0xf]
    %v1147 = vld [vmem:[#allocation6 + $0x30] sm:$0xf]
    %v1148 = vld [vmem:[#allocation6 + $0x34] sm:$0xf]
    %v1149 = vld [vmem:[#allocation6 + $0x38] sm:$0xf]
    %v1150 = vld [vmem:[#allocation6 + $0x3c] sm:$0xf]
    %v1151 = vld [vmem:[#allocation6 + $0x40] sm:$0xf]
    %v1152 = vld [vmem:[#allocation6 + $0x44] sm:$0xf]
    %v1153 = vld [vmem:[#allocation6 + $0x48] sm:$0xf]
    %v1154 = vld [vmem:[#allocation6 + $0x4c] sm:$0xf]
    %v1155 = vld [vmem:[#allocation6 + $0x50] sm:$0xf]
    %v1156 = vld [vmem:[#allocation6 + $0x54] sm:$0xf]
    %v1157 = vld [vmem:[#allocation6 + $0x58] sm:$0xf]
    %v1158 = vld [vmem:[#allocation6 + $0x5c] sm:$0xf]
    %v1159 = vld [vmem:[#allocation6 + $0x60] sm:$0xf]
    %v1160 = vld [vmem:[#allocation6 + $0x64] sm:$0xf]
    %v1161 = vld [vmem:[#allocation6 + $0x68] sm:$0xf]
    %v1162 = vld [vmem:[#allocation6 + $0x6c] sm:$0xf]
    %v1163 = vld [vmem:[#allocation6 + $0x70] sm:$0xf]
    %v1164 = vld [vmem:[#allocation6 + $0x74] sm:$0xf]
    %v1165 = vld [vmem:[#allocation6 + $0x78] sm:$0xf]
    %v1166 = vld [vmem:[#allocation6 + $0x7c] sm:$0xf]
    %v1167 = vld [vmem:[#allocation7] sm:$0x1]
    %v1169 = vperm.slane %v1167, 0
    %v1203 = vunpack.c.l.b16 %v1135
    %v1204 = vunpack.c.l.b16 %v1136
    %v1205 = vunpack.c.l.b16 %v1137
    %v1206 = vunpack.c.l.b16 %v1138
    %v1207 = vunpack.c.l.b16 %v1139
    %v1208 = vunpack.c.l.b16 %v1140
    %v1209 = vunpack.c.l.b16 %v1141
    %v1210 = vunpack.c.l.b16 %v1142
    %v1211 = vunpack.c.l.b16 %v1143
    %v1212 = vunpack.c.l.b16 %v1144
    %v1213 = vunpack.c.l.b16 %v1145
    %v1214 = vunpack.c.l.b16 %v1146
    %v1215 = vunpack.c.l.b16 %v1147
    %v1216 = vunpack.c.l.b16 %v1148
    %v1217 = vunpack.c.l.b16 %v1149
    %v1218 = vunpack.c.l.b16 %v1150
    %v1219 = vunpack.c.l.b16 %v1151
    %v1220 = vunpack.c.l.b16 %v1152
    %v1221 = vunpack.c.l.b16 %v1153
    %v1222 = vunpack.c.l.b16 %v1154
    %v1223 = vunpack.c.l.b16 %v1155
    %v1224 = vunpack.c.l.b16 %v1156
    %v1225 = vunpack.c.l.b16 %v1157
    %v1226 = vunpack.c.l.b16 %v1158
    %v1227 = vunpack.c.l.b16 %v1159
    %v1228 = vunpack.c.l.b16 %v1160
    %v1229 = vunpack.c.l.b16 %v1161
    %v1230 = vunpack.c.l.b16 %v1162
    %v1231 = vunpack.c.l.b16 %v1163
    %v1232 = vunpack.c.l.b16 %v1164
    %v1233 = vunpack.c.l.b16 %v1165
    %v1234 = vunpack.c.l.b16 %v1166
    %v1235 = vpack.c.b16 %v1204, %v1203
    %v1236 = vpack.c.b16 %v1206, %v1205
    %v1237 = vpack.c.b16 %v1208, %v1207
    %v1238 = vpack.c.b16 %v1210, %v1209
    %v1239 = vpack.c.b16 %v1212, %v1211
    %v1240 = vpack.c.b16 %v1214, %v1213
    %v1241 = vpack.c.b16 %v1216, %v1215
    %v1242 = vpack.c.b16 %v1218, %v1217
    %v1243 = vpack.c.b16 %v1220, %v1219
    %v1244 = vpack.c.b16 %v1222, %v1221
    %v1245 = vpack.c.b16 %v1224, %v1223
    %v1246 = vpack.c.b16 %v1226, %v1225
    %v1247 = vpack.c.b16 %v1228, %v1227
    %v1248 = vpack.c.b16 %v1230, %v1229
    %v1249 = vpack.c.b16 %v1232, %v1231
    %v1250 = vpack.c.b16 %v1234, %v1233
    %1267 = vmatpush.bf16.msra.mxu0 %v1242
    %1268 = vmatpush.bf16.msra.mxu0 %v1241
    %1269 = vmatpush.bf16.msra.mxu0 %v1240
    %1270 = vmatpush.bf16.msra.mxu0 %v1239
    %1271 = vmatpush.bf16.msra.mxu0 %v1238
    %1272 = vmatpush.bf16.msra.mxu0 %v1237
    %1273 = vmatpush.bf16.msra.mxu0 %v1236
    %1274 = vmatpush.bf16.msra.mxu0 %v1235
    %1275 = vmatmul.bf16.gmra.mxu0 %v1127
    %v1276 = vpop.f32.mrf.mxu0
    %v1277 = vadd.f32 %v1169, %v1276
    %v1278 = vpop.f32.mrf.mxu0
    %v1279 = vadd.f32 %v1169, %v1278
    %1280 = vdwg.mxu0
    %1281 = vmatpush.bf16.msra.mxu0 %v1250
    %1282 = vmatpush.bf16.msra.mxu0 %v1249
    %1283 = vmatpush.bf16.msra.mxu0 %v1248
    %1284 = vmatpush.bf16.msra.mxu0 %v1247
    %1285 = vmatpush.bf16.msra.mxu0 %v1246
    %1286 = vmatpush.bf16.msra.mxu0 %v1245
    %1287 = vmatpush.bf16.msra.mxu0 %v1244
    %1288 = vmatpush.bf16.msra.mxu0 %v1243
    %1289 = vmatmul.bf16.gmra.mxu0 %v1128
    %v1290 = vpop.f32.mrf.mxu0
    %v1291 = vadd.f32 %v1277, %v1290
    %v1292 = vpop.f32.mrf.mxu0
    %v1293 = vadd.f32 %v1279, %v1292
    %1294 = vdwg.mxu0
    %1295 = vst [vmem:[#allocation15] sm:$0xff] %v1291
    %1296 = vst [vmem:[#allocation15 + $0x8] sm:$0xff] %v1293
    // Predicated region
    $region128: #{audio_classifier_forward.1} parent=1 // pred_check
      _
    $region129: #{audio_classifier_forward.1} parent=1 // pred_check_branch
      %1298 = sbr.rel (0) target = $region131
    $region130: #{audio_classifier_forward.1} parent=1 // pred_region
      %1300 = vsyncadd [#allocation11], 128
      %s1301 = sshll.u32 [#allocation15], 4
      %s1302 = int_to_ptr.vmem [resolvable:$true] %s1301
      %s1303 = sshll.u32 %s9, 4
      %s1304 = int_to_ptr.hbm [resolvable:$true] %s1303
      %1309 = dma.vmem_to_hbm [thread:$0]  %s1302, 128, %s1304, [#allocation11], 128, 128, 8
    $region131: #{audio_classifier_forward.1} parent=1 // pred_fallthru
      _
    // Predicated region
    $region132: #{audio_classifier_forward.1} parent=1 // pred_check
      _
    $region133: #{audio_classifier_forward.1} parent=1 // pred_check_branch
      %1311 = sbr.rel (0) target = $region135
    $region134: #{audio_classifier_forward.1} parent=1 // pred_region
      %1313 = dma.done [#allocation11], 256
    $region135: #{audio_classifier_forward.1} parent=1 // pred_fallthru
      _
    %1314 = vsyncpa [#allocation10], 1
    %1315 = vsyncpa [#allocation13], 1
    %1316 = vsyncpa [#allocation11], 1
  %1317 = vsyncmov [#allocation8]
  %s1318 = vpop.sfrf %1317
  %p1319 = scmp.eq.s32.totalorder %s1318, 0
  %p1320 = pneg %p1319
  %1322 = shalt.err (%p1320)
  %s1323 = scalar_lea.sflag [#allocation8], 1
  %1324 = vsyncmov %s1323
  %s1325 = vpop.sfrf %1324
  %p1326 = scmp.eq.s32.totalorder %s1325, 0
  %p1327 = pneg %p1326
  %1329 = shalt.err (%p1327)
  %s1330 = scalar_lea.sflag [#allocation8], 2
  %1331 = vsyncmov %s1330
  %s1332 = vpop.sfrf %1331
  %p1333 = scmp.eq.s32.totalorder %s1332, 0
  %p1334 = pneg %p1333
  %1336 = shalt.err (%p1334)
  %s1337 = scalar_lea.sflag [#allocation8], 3
  %1338 = vsyncmov %s1337
  %s1339 = vpop.sfrf %1338
  %p1340 = scmp.eq.s32.totalorder %s1339, 0
  %p1341 = pneg %p1340
  %1343 = shalt.err (%p1341)
  %s1344 = scalar_lea.sflag [#allocation8], 4
  %1345 = vsyncmov %s1344
  %s1346 = vpop.sfrf %1345
  %p1347 = scmp.eq.s32.totalorder %s1346, 0
  %p1348 = pneg %p1347
  %1350 = shalt.err (%p1348)
  %s1351 = scalar_lea.sflag [#allocation8], 5
  %1352 = vsyncmov %s1351
  %s1353 = vpop.sfrf %1352
  %p1354 = scmp.eq.s32.totalorder %s1353, 0
  %p1355 = pneg %p1354
  %1357 = shalt.err (%p1355)

</llo_original>
